<compile_context>
chip_gen: v7x
topology: tpu7x:2x2x1
jax: 0.10.0
libtpu: 0.0.40
codegen_flags: <defaults>
</compile_context>

<pallas_src>
import jax
import jax.numpy as jnp
from jax.experimental import pallas as pl
from jax.experimental.pallas import tpu as pltpu


def _pick_tile(n, cap):
    """Largest multiple-of-128 tile <= cap that divides n, else the full dim."""
    limit = min(cap, n)
    for cand in (512, 384, 256, 128):
        if cand <= limit and n % cand == 0:
            return cand
    return n  # full extent is always a legal block shape


# ---------------------------------------------------------------------------
# Kernel 1: hidden1 = relu(adj @ x @ W1)          (gc1; dropout = identity)
# ---------------------------------------------------------------------------
def _gc1_kernel(adj_ref, x_ref, w1_ref, h1_ref, acc_ref):
    k = pl.program_id(1)

    @pl.when(k == 0)
    def _():
        acc_ref[...] = jnp.zeros_like(acc_ref)

    acc_ref[...] += jnp.dot(adj_ref[...], x_ref[...],
                            preferred_element_type=jnp.float32)

    @pl.when(k == pl.num_programs(1) - 1)
    def _():
        h = jnp.dot(acc_ref[...].astype(jnp.bfloat16), w1_ref[...],
                    preferred_element_type=jnp.float32)
        h1_ref[...] = jnp.maximum(h, 0.0).astype(h1_ref.dtype)


# ---------------------------------------------------------------------------
# Kernel 2: mu = adj @ hidden1 @ W2 ; logvar = adj @ hidden1 @ W3  (gc2 + gc3)
# The expensive adj @ hidden1 accumulation is shared between both heads; the
# kernel also writes a bf16 copy of mu for the decoder (no XLA cast needed).
# ---------------------------------------------------------------------------
def _gc23_kernel(adj_ref, h1_ref, w2_ref, w3_ref,
                 mu_ref, logvar_ref, mu_bf_ref, acc_ref):
    k = pl.program_id(1)

    @pl.when(k == 0)
    def _():
        acc_ref[...] = jnp.zeros_like(acc_ref)

    acc_ref[...] += jnp.dot(adj_ref[...], h1_ref[...],
                            preferred_element_type=jnp.float32)

    @pl.when(k == pl.num_programs(1) - 1)
    def _():
        acc_bf = acc_ref[...].astype(jnp.bfloat16)
        mu = jnp.dot(acc_bf, w2_ref[...], preferred_element_type=jnp.float32)
        lv = jnp.dot(acc_bf, w3_ref[...], preferred_element_type=jnp.float32)
        mu_ref[...] = mu
        logvar_ref[...] = lv
        mu_bf_ref[...] = mu.astype(jnp.bfloat16)


# ---------------------------------------------------------------------------
# Kernel 3: pred_adj = mu @ mu.T   (InnerProductDecoder, z = mu in eval mode)
# Contract on the last axis of both operands (trans-B matmul), no transpose.
# ---------------------------------------------------------------------------
def _decoder_kernel(mu_i_ref, mu_j_ref, pred_ref):
    pred_ref[...] = jax.lax.dot_general(
        mu_i_ref[...], mu_j_ref[...],
        dimension_numbers=(((1,), (1,)), ((), ())),
        preferred_element_type=jnp.float32)


def gcn_vaecd_forward(x, adj, w1, w2, w3, *, tile_m=128, tile_k=256, tile_n=256):
    N, F = x.shape
    H1 = w1.shape[1]
    H2 = w2.shape[1]

    tm = _pick_tile(N, tile_m)   # adj row tile (megacore-parallel axis)
    tk = _pick_tile(N, tile_k)   # reduction tile over adj columns
    tn = _pick_tile(N, tile_n)   # decoder output column tile (lane-dense)

    # bf16 MXU inputs; all accumulation stays in f32 inside the kernels.
    adj_bf = adj.astype(jnp.bfloat16)
    x_bf = x.astype(jnp.bfloat16)
    w1_bf = w1.astype(jnp.bfloat16)
    w2_bf = w2.astype(jnp.bfloat16)
    w3_bf = w3.astype(jnp.bfloat16)

    # ---- gc1: hidden1 = relu(adj @ x @ W1) ----
    h1 = pl.pallas_call(
        _gc1_kernel,
        out_shape=jax.ShapeDtypeStruct((N, H1), jnp.bfloat16),
        grid_spec=pltpu.PrefetchScalarGridSpec(
            num_scalar_prefetch=0,
            grid=(N // tm, N // tk),
            in_specs=[
                pl.BlockSpec((tm, tk), lambda i, k: (i, k)),   # adj row block
                pl.BlockSpec((tk, F), lambda i, k: (k, 0)),    # x k block
                pl.BlockSpec((F, H1), lambda i, k: (0, 0)),    # W1 resident
            ],
            out_specs=pl.BlockSpec((tm, H1), lambda i, k: (i, 0)),
            scratch_shapes=[pltpu.VMEM((tm, F), jnp.float32)],
        ),
        compiler_params=pltpu.CompilerParams(
            dimension_semantics=("parallel", "arbitrary")),
        cost_estimate=pl.CostEstimate(
            flops=2 * N * N * F + 2 * N * F * H1,
            transcendentals=0,
            bytes_accessed=2 * (N * N + N * F + F * H1 + N * H1)),
    )(adj_bf, x_bf, w1_bf)

    # ---- gc2 + gc3: mu / logvar share one adj @ hidden1 accumulation ----
    mu, logvar, mu_bf = pl.pallas_call(
        _gc23_kernel,
        out_shape=(
            jax.ShapeDtypeStruct((N, H2), jnp.float32),    # mu
            jax.ShapeDtypeStruct((N, H2), jnp.float32),    # logvar
            jax.ShapeDtypeStruct((N, H2), jnp.bfloat16),   # mu (decoder input)
        ),
        grid_spec=pltpu.PrefetchScalarGridSpec(
            num_scalar_prefetch=0,
            grid=(N // tm, N // tk),
            in_specs=[
                pl.BlockSpec((tm, tk), lambda i, k: (i, k)),     # adj
                pl.BlockSpec((tk, H1), lambda i, k: (k, 0)),     # hidden1
                pl.BlockSpec((H1, H2), lambda i, k: (0, 0)),     # W2 resident
                pl.BlockSpec((H1, H2), lambda i, k: (0, 0)),     # W3 resident
            ],
            out_specs=(
                pl.BlockSpec((tm, H2), lambda i, k: (i, 0)),
                pl.BlockSpec((tm, H2), lambda i, k: (i, 0)),
                pl.BlockSpec((tm, H2), lambda i, k: (i, 0)),
            ),
            scratch_shapes=[pltpu.VMEM((tm, H1), jnp.float32)],
        ),
        compiler_params=pltpu.CompilerParams(
            dimension_semantics=("parallel", "arbitrary")),
        cost_estimate=pl.CostEstimate(
            flops=2 * N * N * H1 + 2 * 2 * N * H1 * H2,
            transcendentals=0,
            bytes_accessed=2 * N * N + 2 * N * H1 + 2 * 2 * H1 * H2
                            + (4 + 4 + 2) * N * H2),
    )(adj_bf, h1, w2_bf, w3_bf)

    # ---- decoder: pred_adj = mu @ mu.T (reparameterize == identity in eval) ----
    pred_adj = pl.pallas_call(
        _decoder_kernel,
        out_shape=jax.ShapeDtypeStruct((N, N), jnp.float32),
        grid_spec=pltpu.PrefetchScalarGridSpec(
            num_scalar_prefetch=0,
            grid=(N // tm, N // tn),
            in_specs=[
                pl.BlockSpec((tm, H2), lambda i, j: (i, 0)),
                pl.BlockSpec((tn, H2), lambda i, j: (j, 0)),
            ],
            out_specs=pl.BlockSpec((tm, tn), lambda i, j: (i, j)),
        ),
        compiler_params=pltpu.CompilerParams(
            dimension_semantics=("parallel", "parallel")),
        cost_estimate=pl.CostEstimate(
            flops=2 * N * N * H2,
            transcendentals=0,
            bytes_accessed=2 * 2 * N * H2 + 4 * N * N),
    )(mu_bf, mu_bf)

    return pred_adj, mu, logvar


def _glorot(key, shape):
    fan_in, fan_out = shape
    limit = jnp.sqrt(6.0 / (fan_in + fan_out))
    return jax.random.uniform(key, shape, jnp.float32, -limit, limit)


def _reference(x, adj, w1, w2, w3):
    hidden1 = jnp.maximum(adj @ (x @ w1), 0.0)
    mu = adj @ (hidden1 @ w2)
    logvar = adj @ (hidden1 @ w3)
    return mu @ mu.T, mu, logvar


def _rel_err(a, b):
    return float(jnp.linalg.norm(a - b) / jnp.maximum(jnp.linalg.norm(b), 1e-12))


if __name__ == "__main__":
    # Small, module-consistent shapes (big enough to exercise the 128-tiled grid).
    N = 256           # n_nodes
    F = 32            # input_feat_dim
    H1 = 64           # hidden_dim1
    H2 = 32           # hidden_dim2
    N_CLUSTERS = 4

    key = jax.random.PRNGKey(0)
    k_x, k_adj, k_w1, k_w2, k_w3, k_muc, k_lsc = jax.random.split(key, 7)

    # Node features.
    x = jax.random.normal(k_x, (N, F), jnp.float32)

    # Deterministic symmetric-normalized adjacency (self-loops added).
    a = (jax.random.uniform(k_adj, (N, N)) < 0.3).astype(jnp.float32)
    a = jnp.maximum(a, a.T)
    a = a + jnp.eye(N, dtype=jnp.float32)
    deg = jnp.sum(a, axis=1)
    d_inv_sqrt = 1.0 / jnp.sqrt(deg)
    adj = a * d_inv_sqrt[:, None] * d_inv_sqrt[None, :]

    # GCN weights (glorot-style deterministic init).
    w1 = _glorot(k_w1, (F, H1))
    w2 = _glorot(k_w2, (H1, H2))
    w3 = _glorot(k_w3, (H1, H2))

    # Cluster parameters from __init__ (unused by forward()).
    pi_ = jnp.full((N_CLUSTERS,), 1.0 / N_CLUSTERS, jnp.float32)
    mu_c = jax.random.normal(k_muc, (N_CLUSTERS, H2), jnp.float32)
    log_sigma2_c = jax.random.normal(k_lsc, (N_CLUSTERS, H2), jnp.float32)

    fwd = jax.jit(gcn_vaecd_forward)
    pred_adj, mu, logvar = fwd(x, adj, w1, w2, w3)
    jax.block_until_ready((pred_adj, mu, logvar))

    # Sanity check against a plain-JAX f32 reference (bf16 MXU inputs -> loose tol).
    ref_pred, ref_mu, ref_logvar = _reference(x, adj, w1, w2, w3)
    assert _rel_err(mu, ref_mu) < 5e-2
    assert _rel_err(logvar, ref_logvar) < 5e-2
    assert _rel_err(pred_adj, ref_pred) < 5e-2

    # TODO(synk): training-mode dropout / reparameterization noise (stochastic)
    # intentionally omitted; eval-mode forward is implemented.
    print("KERNEL_OK")
</pallas_src>

<mosaic_0001>
module attributes {stable_mosaic.version = 11 : i64} {
  func.func @_gc1_kernel(%arg0: i32, %arg1: i32, %arg2: memref<128x256xbf16, #tpu.memory_space<vmem>>, %arg3: memref<256x32xbf16, #tpu.memory_space<vmem>>, %arg4: memref<32x64xbf16, #tpu.memory_space<vmem>>, %arg5: memref<128x64xbf16, #tpu.memory_space<vmem>>, %arg6: memref<128x32xf32, #tpu.memory_space<vmem>>) attributes {dimension_semantics = [#tpu.dimension_semantics<parallel>, #tpu.dimension_semantics<arbitrary>], iteration_bounds = array<i64: 2, 1>, scalar_prefetch = 0 : i64, scratch_operands = 1 : i64, tpu.core_type = #tpu.core_type<tc>, window_params = [{transform_indices = @transform_0, window_bounds = array<i64: 128, 256>}, {transform_indices = @transform_1, window_bounds = array<i64: 256, 32>}, {pipeline_mode = #tpu.pipeline_mode<synchronous>, transform_indices = @transform_2, window_bounds = array<i64: 32, 64>}, {transform_indices = @transform_3, window_bounds = array<i64: 128, 64>}]} {
    %c0_i32 = arith.constant 0 : i32
    %0 = arith.cmpi eq, %arg1, %c0_i32 : i32
    %1 = arith.extui %0 : i1 to i32
    %c0_i32_0 = arith.constant 0 : i32
    %2 = arith.cmpi ne, %1, %c0_i32_0 : i32
    scf.if %2 {
      %cst_10 = arith.constant 0.000000e+00 : f32
      %12 = vector.broadcast %cst_10 : f32 to vector<128x32xf32>
      %c0_11 = arith.constant 0 : index
      %c0_12 = arith.constant 0 : index
      %13 = vector.load %arg6[%c0_11, %c0_12] : memref<128x32xf32, #tpu.memory_space<vmem>>, vector<128x32xf32>
      tpu.vector_store %arg6[%c0_11, %c0_12], %12 {strides = array<i32>} : memref<128x32xf32, #tpu.memory_space<vmem>>, vector<128x32xf32>,
    } else {
    }
    %c0 = arith.constant 0 : index
    %c0_1 = arith.constant 0 : index
    %3 = vector.load %arg6[%c0, %c0_1] : memref<128x32xf32, #tpu.memory_space<vmem>>, vector<128x32xf32>
    %c0_2 = arith.constant 0 : index
    %c0_3 = arith.constant 0 : index
    %4 = vector.load %arg2[%c0_2, %c0_3] : memref<128x256xbf16, #tpu.memory_space<vmem>>, vector<128x256xbf16>
    %c0_4 = arith.constant 0 : index
    %c0_5 = arith.constant 0 : index
    %5 = vector.load %arg3[%c0_4, %c0_5] : memref<256x32xbf16, #tpu.memory_space<vmem>>, vector<256x32xbf16>
    %cst = arith.constant dense<0.000000e+00> : vector<128x32xf32>
    %6 = tpu.matmul %4, %5, %cst {dimension_numbers = #tpu.dot_dimension_numbers<[1], [0], [0], [1], [0, 0, 1, 1], [], []>} : vector<128x256xbf16>, vector<256x32xbf16>, vector<128x32xf32> -> vector<128x32xf32>
    %7 = arith.addf %3, %6 : vector<128x32xf32>
    %c0_6 = arith.constant 0 : index
    %c0_7 = arith.constant 0 : index
    %8 = vector.load %arg6[%c0_6, %c0_7] : memref<128x32xf32, #tpu.memory_space<vmem>>, vector<128x32xf32>
    tpu.vector_store %arg6[%c0_6, %c0_7], %7 {strides = array<i32>} : memref<128x32xf32, #tpu.memory_space<vmem>>, vector<128x32xf32>,
    %c0_i32_8 = arith.constant 0 : i32
    %9 = arith.cmpi eq, %arg1, %c0_i32_8 : i32
    %10 = arith.extui %9 : i1 to i32
    %c0_i32_9 = arith.constant 0 : i32
    %11 = arith.cmpi ne, %10, %c0_i32_9 : i32
    scf.if %11 {
      %c0_10 = arith.constant 0 : index
      %c0_11 = arith.constant 0 : index
      %12 = vector.load %arg6[%c0_10, %c0_11] : memref<128x32xf32, #tpu.memory_space<vmem>>, vector<128x32xf32>
      %13 = arith.truncf %12 : vector<128x32xf32> to vector<128x32xbf16>
      %c0_12 = arith.constant 0 : index
      %c0_13 = arith.constant 0 : index
      %14 = vector.load %arg4[%c0_12, %c0_13] : memref<32x64xbf16, #tpu.memory_space<vmem>>, vector<32x64xbf16>
      %cst_14 = arith.constant dense<0.000000e+00> : vector<128x64xf32>
      %15 = tpu.matmul %13, %14, %cst_14 {dimension_numbers = #tpu.dot_dimension_numbers<[1], [0], [0], [1], [0, 0, 1, 1], [], []>} : vector<128x32xbf16>, vector<32x64xbf16>, vector<128x64xf32> -> vector<128x64xf32>
      %cst_15 = arith.constant 0.000000e+00 : f32
      %16 = vector.broadcast %cst_15 : f32 to vector<128x64xf32>
      %17 = arith.maximumf %15, %16 : vector<128x64xf32>
      %18 = arith.truncf %17 : vector<128x64xf32> to vector<128x64xbf16>
      %c0_16 = arith.constant 0 : index
      %c0_17 = arith.constant 0 : index
      %19 = vector.load %arg5[%c0_16, %c0_17] : memref<128x64xbf16, #tpu.memory_space<vmem>>, vector<128x64xbf16>
      tpu.vector_store %arg5[%c0_16, %c0_17], %18 {strides = array<i32>} : memref<128x64xbf16, #tpu.memory_space<vmem>>, vector<128x64xbf16>,
    } else {
    }
    return
  }
  func.func @transform_0(%arg0: i32, %arg1: i32) -> (i32, i32) {
    %c0_i32 = arith.constant 0 : i32
    return %arg0, %arg1 : i32, i32
  }
  func.func @transform_1(%arg0: i32, %arg1: i32) -> (i32, i32) {
    %c0_i32 = arith.constant 0 : i32
    %c0_i32_0 = arith.constant 0 : i32
    return %arg1, %c0_i32 : i32, i32
  }
  func.func @transform_2(%arg0: i32, %arg1: i32) -> (i32, i32) {
    %c0_i32 = arith.constant 0 : i32
    %c0_i32_0 = arith.constant 0 : i32
    %c0_i32_1 = arith.constant 0 : i32
    return %c0_i32, %c0_i32_0 : i32, i32
  }
  func.func @transform_3(%arg0: i32, %arg1: i32) -> (i32, i32) {
    %c0_i32 = arith.constant 0 : i32
    %c0_i32_0 = arith.constant 0 : i32
    return %arg0, %c0_i32 : i32, i32
  }
}

module attributes {stable_mosaic.version = 11 : i64} {
  func.func @_gc23_kernel(%arg0: i32, %arg1: i32, %arg2: memref<128x256xbf16, #tpu.memory_space<vmem>>, %arg3: memref<256x64xbf16, #tpu.memory_space<vmem>>, %arg4: memref<64x32xbf16, #tpu.memory_space<vmem>>, %arg5: memref<64x32xbf16, #tpu.memory_space<vmem>>, %arg6: memref<128x32xf32, #tpu.memory_space<vmem>>, %arg7: memref<128x32xf32, #tpu.memory_space<vmem>>, %arg8: memref<128x32xbf16, #tpu.memory_space<vmem>>, %arg9: memref<128x64xf32, #tpu.memory_space<vmem>>) attributes {dimension_semantics = [#tpu.dimension_semantics<parallel>, #tpu.dimension_semantics<arbitrary>], iteration_bounds = array<i64: 2, 1>, scalar_prefetch = 0 : i64, scratch_operands = 1 : i64, tpu.core_type = #tpu.core_type<tc>, window_params = [{transform_indices = @transform_0, window_bounds = array<i64: 128, 256>}, {transform_indices = @transform_1, window_bounds = array<i64: 256, 64>}, {pipeline_mode = #tpu.pipeline_mode<synchronous>, transform_indices = @transform_2, window_bounds = array<i64: 64, 32>}, {pipeline_mode = #tpu.pipeline_mode<synchronous>, transform_indices = @transform_3, window_bounds = array<i64: 64, 32>}, {transform_indices = @transform_4, window_bounds = array<i64: 128, 32>}, {transform_indices = @transform_5, window_bounds = array<i64: 128, 32>}, {transform_indices = @transform_6, window_bounds = array<i64: 128, 32>}]} {
    %c0_i32 = arith.constant 0 : i32
    %0 = arith.cmpi eq, %arg1, %c0_i32 : i32
    %1 = arith.extui %0 : i1 to i32
    %c0_i32_0 = arith.constant 0 : i32
    %2 = arith.cmpi ne, %1, %c0_i32_0 : i32
    scf.if %2 {
      %cst_10 = arith.constant 0.000000e+00 : f32
      %12 = vector.broadcast %cst_10 : f32 to vector<128x64xf32>
      %c0_11 = arith.constant 0 : index
      %c0_12 = arith.constant 0 : index
      %13 = vector.load %arg9[%c0_11, %c0_12] : memref<128x64xf32, #tpu.memory_space<vmem>>, vector<128x64xf32>
      tpu.vector_store %arg9[%c0_11, %c0_12], %12 {strides = array<i32>} : memref<128x64xf32, #tpu.memory_space<vmem>>, vector<128x64xf32>,
    } else {
    }
    %c0 = arith.constant 0 : index
    %c0_1 = arith.constant 0 : index
    %3 = vector.load %arg9[%c0, %c0_1] : memref<128x64xf32, #tpu.memory_space<vmem>>, vector<128x64xf32>
    %c0_2 = arith.constant 0 : index
    %c0_3 = arith.constant 0 : index
    %4 = vector.load %arg2[%c0_2, %c0_3] : memref<128x256xbf16, #tpu.memory_space<vmem>>, vector<128x256xbf16>
    %c0_4 = arith.constant 0 : index
    %c0_5 = arith.constant 0 : index
    %5 = vector.load %arg3[%c0_4, %c0_5] : memref<256x64xbf16, #tpu.memory_space<vmem>>, vector<256x64xbf16>
    %cst = arith.constant dense<0.000000e+00> : vector<128x64xf32>
    %6 = tpu.matmul %4, %5, %cst {dimension_numbers = #tpu.dot_dimension_numbers<[1], [0], [0], [1], [0, 0, 1, 1], [], []>} : vector<128x256xbf16>, vector<256x64xbf16>, vector<128x64xf32> -> vector<128x64xf32>
    %7 = arith.addf %3, %6 : vector<128x64xf32>
    %c0_6 = arith.constant 0 : index
    %c0_7 = arith.constant 0 : index
    %8 = vector.load %arg9[%c0_6, %c0_7] : memref<128x64xf32, #tpu.memory_space<vmem>>, vector<128x64xf32>
    tpu.vector_store %arg9[%c0_6, %c0_7], %7 {strides = array<i32>} : memref<128x64xf32, #tpu.memory_space<vmem>>, vector<128x64xf32>,
    %c0_i32_8 = arith.constant 0 : i32
    %9 = arith.cmpi eq, %arg1, %c0_i32_8 : i32
    %10 = arith.extui %9 : i1 to i32
    %c0_i32_9 = arith.constant 0 : i32
    %11 = arith.cmpi ne, %10, %c0_i32_9 : i32
    scf.if %11 {
      %c0_10 = arith.constant 0 : index
      %c0_11 = arith.constant 0 : index
      %12 = vector.load %arg9[%c0_10, %c0_11] : memref<128x64xf32, #tpu.memory_space<vmem>>, vector<128x64xf32>
      %13 = arith.truncf %12 : vector<128x64xf32> to vector<128x64xbf16>
      %c0_12 = arith.constant 0 : index
      %c0_13 = arith.constant 0 : index
      %14 = vector.load %arg4[%c0_12, %c0_13] : memref<64x32xbf16, #tpu.memory_space<vmem>>, vector<64x32xbf16>
      %cst_14 = arith.constant dense<0.000000e+00> : vector<128x32xf32>
      %15 = tpu.matmul %13, %14, %cst_14 {dimension_numbers = #tpu.dot_dimension_numbers<[1], [0], [0], [1], [0, 0, 1, 1], [], []>} : vector<128x64xbf16>, vector<64x32xbf16>, vector<128x32xf32> -> vector<128x32xf32>
      %c0_15 = arith.constant 0 : index
      %c0_16 = arith.constant 0 : index
      %16 = vector.load %arg5[%c0_15, %c0_16] : memref<64x32xbf16, #tpu.memory_space<vmem>>, vector<64x32xbf16>
      %cst_17 = arith.constant dense<0.000000e+00> : vector<128x32xf32>
      %17 = tpu.matmul %13, %16, %cst_17 {dimension_numbers = #tpu.dot_dimension_numbers<[1], [0], [0], [1], [0, 0, 1, 1], [], []>} : vector<128x64xbf16>, vector<64x32xbf16>, vector<128x32xf32> -> vector<128x32xf32>
      %c0_18 = arith.constant 0 : index
      %c0_19 = arith.constant 0 : index
      %18 = vector.load %arg6[%c0_18, %c0_19] : memref<128x32xf32, #tpu.memory_space<vmem>>, vector<128x32xf32>
      tpu.vector_store %arg6[%c0_18, %c0_19], %15 {strides = array<i32>} : memref<128x32xf32, #tpu.memory_space<vmem>>, vector<128x32xf32>,
      %c0_20 = arith.constant 0 : index
      %c0_21 = arith.constant 0 : index
      %19 = vector.load %arg7[%c0_20, %c0_21] : memref<128x32xf32, #tpu.memory_space<vmem>>, vector<128x32xf32>
      tpu.vector_store %arg7[%c0_20, %c0_21], %17 {strides = array<i32>} : memref<128x32xf32, #tpu.memory_space<vmem>>, vector<128x32xf32>,
      %20 = arith.truncf %15 : vector<128x32xf32> to vector<128x32xbf16>
      %c0_22 = arith.constant 0 : index
      %c0_23 = arith.constant 0 : index
      %21 = vector.load %arg8[%c0_22, %c0_23] : memref<128x32xbf16, #tpu.memory_space<vmem>>, vector<128x32xbf16>
      tpu.vector_store %arg8[%c0_22, %c0_23], %20 {strides = array<i32>} : memref<128x32xbf16, #tpu.memory_space<vmem>>, vector<128x32xbf16>,
    } else {
    }
    return
  }
  func.func @transform_0(%arg0: i32, %arg1: i32) -> (i32, i32) {
    %c0_i32 = arith.constant 0 : i32
    return %arg0, %arg1 : i32, i32
  }
  func.func @transform_1(%arg0: i32, %arg1: i32) -> (i32, i32) {
    %c0_i32 = arith.constant 0 : i32
    %c0_i32_0 = arith.constant 0 : i32
    return %arg1, %c0_i32 : i32, i32
  }
  func.func @transform_2(%arg0: i32, %arg1: i32) -> (i32, i32) {
    %c0_i32 = arith.constant 0 : i32
    %c0_i32_0 = arith.constant 0 : i32
    %c0_i32_1 = arith.constant 0 : i32
    return %c0_i32, %c0_i32_0 : i32, i32
  }
  func.func @transform_3(%arg0: i32, %arg1: i32) -> (i32, i32) {
    %c0_i32 = arith.constant 0 : i32
    %c0_i32_0 = arith.constant 0 : i32
    %c0_i32_1 = arith.constant 0 : i32
    return %c0_i32, %c0_i32_0 : i32, i32
  }
  func.func @transform_4(%arg0: i32, %arg1: i32) -> (i32, i32) {
    %c0_i32 = arith.constant 0 : i32
    %c0_i32_0 = arith.constant 0 : i32
    return %arg0, %c0_i32 : i32, i32
  }
  func.func @transform_5(%arg0: i32, %arg1: i32) -> (i32, i32) {
    %c0_i32 = arith.constant 0 : i32
    %c0_i32_0 = arith.constant 0 : i32
    return %arg0, %c0_i32 : i32, i32
  }
  func.func @transform_6(%arg0: i32, %arg1: i32) -> (i32, i32) {
    %c0_i32 = arith.constant 0 : i32
    %c0_i32_0 = arith.constant 0 : i32
    return %arg0, %c0_i32 : i32, i32
  }
}

module attributes {stable_mosaic.version = 11 : i64} {
  func.func @_decoder_kernel(%arg0: i32, %arg1: i32, %arg2: memref<128x32xbf16, #tpu.memory_space<vmem>>, %arg3: memref<256x32xbf16, #tpu.memory_space<vmem>>, %arg4: memref<128x256xf32, #tpu.memory_space<vmem>>) attributes {dimension_semantics = [#tpu.dimension_semantics<parallel>, #tpu.dimension_semantics<parallel>], iteration_bounds = array<i64: 2, 1>, scalar_prefetch = 0 : i64, scratch_operands = 0 : i64, tpu.core_type = #tpu.core_type<tc>, window_params = [{transform_indices = @transform_0, window_bounds = array<i64: 128, 32>}, {transform_indices = @transform_1, window_bounds = array<i64: 256, 32>}, {transform_indices = @transform_2, window_bounds = array<i64: 128, 256>}]} {
    %c0 = arith.constant 0 : index
    %c0_0 = arith.constant 0 : index
    %0 = vector.load %arg2[%c0, %c0_0] : memref<128x32xbf16, #tpu.memory_space<vmem>>, vector<128x32xbf16>
    %c0_1 = arith.constant 0 : index
    %c0_2 = arith.constant 0 : index
    %1 = vector.load %arg3[%c0_1, %c0_2] : memref<256x32xbf16, #tpu.memory_space<vmem>>, vector<256x32xbf16>
    %cst = arith.constant dense<0.000000e+00> : vector<128x256xf32>
    %2 = tpu.matmul %0, %1, %cst {dimension_numbers = #tpu.dot_dimension_numbers<[1], [1], [0], [0], [0, 0, 1, 0], [], []>} : vector<128x32xbf16>, vector<256x32xbf16>, vector<128x256xf32> -> vector<128x256xf32>
    %c0_3 = arith.constant 0 : index
    %c0_4 = arith.constant 0 : index
    %3 = vector.load %arg4[%c0_3, %c0_4] : memref<128x256xf32, #tpu.memory_space<vmem>>, vector<128x256xf32>
    tpu.vector_store %arg4[%c0_3, %c0_4], %2 {strides = array<i32>} : memref<128x256xf32, #tpu.memory_space<vmem>>, vector<128x256xf32>,
    return
  }
  func.func @transform_0(%arg0: i32, %arg1: i32) -> (i32, i32) {
    %c0_i32 = arith.constant 0 : i32
    %c0_i32_0 = arith.constant 0 : i32
    return %arg0, %c0_i32 : i32, i32
  }
  func.func @transform_1(%arg0: i32, %arg1: i32) -> (i32, i32) {
    %c0_i32 = arith.constant 0 : i32
    %c0_i32_0 = arith.constant 0 : i32
    return %arg1, %c0_i32 : i32, i32
  }
  func.func @transform_2(%arg0: i32, %arg1: i32) -> (i32, i32) {
    %c0_i32 = arith.constant 0 : i32
    return %arg0, %arg1 : i32, i32
  }
}

</mosaic_0001>

<llo_original>
// kernel: gcn_vaecd_forward.5
$region0: #{gcn_vaecd_forward.5}
  #allocation0 [shape = 'u32[]', space=smem, size = 0x4, offset = 0x4, fixed_abs, tag = 'smem constant byte address 0x4 - core index']
  #allocation1 [shape = 'u32[144,128]{1,0:T(1,128)}', space=vmem, size = 0x12000, scoped, tag = 'internal scratch']
  %s0 = inlined_call_operand.vmem [shape: bf16[256,32], index: 0, kind: input, shape index: {}, may-alias: {0,1}]
  %s1 = inlined_call_operand.vmem [shape: bf16[256,32], index: 1, kind: input, shape index: {}, may-alias: {0,1}]
  %s2 = inlined_call_operand.hbm [shape: f32[256,256], index: 2, kind: output, shape index: {}]
  %s3 = sld [smem:[#allocation0]]
  $region41: #{gcn_vaecd_forward.5} parent=0
    _
  %s5 = ssub.s32 1, %s3
  %s6 = scalar_select 0, %s5, %s3
  $region1: #{gcn_vaecd_forward.5} parent=0
    #allocation2 [shape = 'u8[262144]{0}', space=vmem, size = 0x40000, scoped, tag = 'output window, operand 0']
    #allocation3 [shape = 's32[2]{0}', space=sflag, size = 0x8, scoped, tag = 'scoped memory for gcn_vaecd_forward.5']
    %7 = vsyncpa [#allocation3], 0
    %s8 = scalar_lea.sflag [#allocation3], 1
    %9 = vsyncpa %s8, 0
    loop: start=0, step=1, limit=4
    $region2: #{gcn_vaecd_forward.5} parent=1 // loop_pre_header
      _
    $region3: #{gcn_vaecd_forward.5} parent=1 // loop_header
      %s11 = sphi 0, %s15
      %p12 = scmp.ge.s32.totalorder %s11, 4
      %s18 = sphi 0, %s30
      %s19 = sphi 0, %s26
      %s20 = sphi 0, %s18
      %s21 = sphi 0, %s19
      %s22 = sphi 0, %s20
      %s23 = sphi 0, %s21
      %s33 = sphi 0, %s35
      %s36 = sphi 0, %s33
      %s37 = sphi 0, %s36
      %s53 = sphi 0, %s37
      %s59 = sphi 0, %s61
      %s62 = sphi 0, %s59
      %s63 = sphi 0, %s62
      %s79 = sphi 0, %s63
      %s87 = sphi 0, %s89
      %s90 = sphi 0, %s87
      %s91 = sphi 0, %s90
      %s107 = sphi 0, %s91
    $region4: #{gcn_vaecd_forward.5} parent=1 // loop_header_branch
      %14 = sbr.rel (%p12) target = $region8
    $region5: #{gcn_vaecd_forward.5} parent=1 // loop_body
      %s16 = ssub.s32 %s11, 1
      %s17 = ssub.s32 %s11, 2
      %s24 = sadd.s32 1, %s19
      %p25 = scmp.ge.s32.totalorder %s24, 1
      %s26 = scalar_select %p25, 0, %s24
      %s27 = sadd.s32 1, %s18
      %s28 = scalar_select %p25, %s27, %s18
      %p29 = scmp.ge.s32.totalorder %s28, 2
      %s30 = scalar_select %p29, 0, %s28
      %s31 = ssub.s32 %s18, %s30
      %p32 = scmp.eq.s32.totalorder %s31, 0
      %s34 = sadd.s32 %s33, 1
      %s35 = scalar_select %p32, %s33, %s34
      %p38 = pneg %p32
      %p39 = scmp.eq.s32.totalorder %s11, 1
      %p40 = por %p38, %p39
      %p41 = scmp.ne.s32.totalorder %s33, %s36
      %p42 = scmp.eq.s32.totalorder %s11, 0
      %p43 = por %p41, %p42
      %p44 = scmp.ne.s32.totalorder %s33, %s36
      %p45 = scmp.eq.s32.totalorder %s16, 1
      %p46 = por %p44, %p45
      %p47 = scmp.ne.s32.totalorder %s36, %s37
      %p48 = scmp.eq.s32.totalorder %s16, 0
      %p49 = por %p47, %p48
      %p50 = scmp.ne.s32.totalorder %s36, %s37
      %p51 = scmp.eq.s32.totalorder %s17, 1
      %p52 = por %p50, %p51
      %p54 = scmp.ne.s32.totalorder %s37, %s53
      %p55 = scmp.eq.s32.totalorder %s17, 0
      %p56 = por %p54, %p55
      %s57 = ssub.s32 %s19, %s26
      %p58 = scmp.eq.s32.totalorder %s57, 0
      %s60 = sadd.s32 %s59, 1
      %s61 = scalar_select %p58, %s59, %s60
      %p64 = pneg %p58
      %p65 = scmp.eq.s32.totalorder %s11, 1
      %p66 = por %p64, %p65
      %p67 = scmp.ne.s32.totalorder %s59, %s62
      %p68 = scmp.eq.s32.totalorder %s11, 0
      %p69 = por %p67, %p68
      %p70 = scmp.ne.s32.totalorder %s59, %s62
      %p71 = scmp.eq.s32.totalorder %s16, 1
      %p72 = por %p70, %p71
      %p73 = scmp.ne.s32.totalorder %s62, %s63
      %p74 = scmp.eq.s32.totalorder %s16, 0
      %p75 = por %p73, %p74
      %p76 = scmp.ne.s32.totalorder %s62, %s63
      %p77 = scmp.eq.s32.totalorder %s17, 1
      %p78 = por %p76, %p77
      %p80 = scmp.ne.s32.totalorder %s63, %s79
      %p81 = scmp.eq.s32.totalorder %s17, 0
      %p82 = por %p80, %p81
      %s83 = ssub.s32 %s18, %s30
      %s84 = ssub.s32 %s19, %s26
      %s85 = sor.u32 %s83, %s84
      %p86 = scmp.eq.s32.totalorder %s85, 0
      %s88 = sadd.s32 %s87, 1
      %s89 = scalar_select %p86, %s87, %s88
      %p92 = pneg %p86
      %p93 = scmp.eq.s32.totalorder %s11, 1
      %p94 = por %p92, %p93
      %p95 = scmp.ne.s32.totalorder %s87, %s90
      %p96 = scmp.eq.s32.totalorder %s11, 0
      %p97 = por %p95, %p96
      %p98 = scmp.ne.s32.totalorder %s87, %s90
      %p99 = scmp.eq.s32.totalorder %s16, 1
      %p100 = por %p98, %p99
      %p101 = scmp.ne.s32.totalorder %s90, %s91
      %p102 = scmp.eq.s32.totalorder %s16, 0
      %p103 = por %p101, %p102
      %p104 = scmp.ne.s32.totalorder %s90, %s91
      %p105 = scmp.eq.s32.totalorder %s17, 1
      %p106 = por %p104, %p105
      %p108 = scmp.ne.s32.totalorder %s91, %s107
      %p109 = scmp.eq.s32.totalorder %s17, 0
      %p110 = por %p108, %p109
      %p111 = scmp.le.s32.totalorder 1, %s11
      %p112 = scmp.lt.s32.totalorder %s11, 3
      %p113 = pnand %p111, %p112
      %p114 = pneg %p113
      // Predicated region
      $region9: #{gcn_vaecd_forward.5} parent=5 // pred_check
        _
      $region10: #{gcn_vaecd_forward.5} parent=5 // pred_check_branch
        %116 = sbr.rel (%p113) target = $region12
      $region11: #{gcn_vaecd_forward.5} parent=5 // pred_region
        %s117 = ssub.s32 %s11, 1
        // Predicated region
        $region13: #{gcn_vaecd_forward.5} parent=11 // pred_check
          %p118 = pneg %p75
        $region14: #{gcn_vaecd_forward.5} parent=11 // pred_check_branch
          %120 = sbr.rel (%p118) target = $region16
        $region15: #{gcn_vaecd_forward.5} parent=11 // pred_region
          %s121 = smul.u32 32, %s21
          %p122 = scmp.lt.s32.totalorder %s121, 31
          %s123 = scalar_select %p122, %s121, 31
          %s124 = smul.addr %s123, 4
          %s125 = scalar_lea.vmem %s1, %s124
          %s126 = smul.u32 32, %s21
        $region16: #{gcn_vaecd_forward.5} parent=11 // pred_fallthru
          _
      $region12: #{gcn_vaecd_forward.5} parent=5 // pred_fallthru
        _
      %p127 = scmp.lt.s32.totalorder %s11, 2
      // Predicated region
      $region17: #{gcn_vaecd_forward.5} parent=5 // pred_check
        %p128 = pneg %p127
      $region18: #{gcn_vaecd_forward.5} parent=5 // pred_check_branch
        %130 = sbr.rel (%p128) target = $region20
      $region19: #{gcn_vaecd_forward.5} parent=5 // pred_region
        // Predicated region
        $region21: #{gcn_vaecd_forward.5} parent=19 // pred_check
          %p131 = pneg %p43
        $region22: #{gcn_vaecd_forward.5} parent=19 // pred_check_branch
          %133 = sbr.rel (%p131) target = $region24
        $region23: #{gcn_vaecd_forward.5} parent=19 // pred_region
          %s134 = smul.u32 16, %s18
          %p135 = scmp.lt.s32.totalorder %s134, 31
          %s136 = scalar_select %p135, %s134, 31
          %s137 = smul.addr %s136, 4
          %s138 = scalar_lea.vmem %s0, %s137
          %s139 = smul.u32 16, %s18
        $region24: #{gcn_vaecd_forward.5} parent=19 // pred_fallthru
          _
      $region20: #{gcn_vaecd_forward.5} parent=5 // pred_fallthru
        _
      %p140 = scmp.le.s32.totalorder 1, %s11
      %p141 = scmp.lt.s32.totalorder %s11, 3
      %p142 = pnand %p140, %p141
      %p143 = pneg %p142
      // Predicated region
      $region25: #{gcn_vaecd_forward.5} parent=5 // pred_check
        _
      $region26: #{gcn_vaecd_forward.5} parent=5 // pred_check_branch
        %145 = sbr.rel (%p142) target = $region28
      $region27: #{gcn_vaecd_forward.5} parent=5 // pred_region
        %s146 = ssub.s32 %s11, 1
        %s147 = smul.u32 16, %s20
        %p148 = scmp.lt.s32.totalorder %s147, 31
        %s149 = scalar_select %p148, %s147, 31
        %s150 = smul.addr %s149, 4
        %s151 = scalar_lea.vmem %s0, %s150
        %p152 = pneg %p49
        %p153 = pneg %p46
        %s154 = smul.u32 32, %s21
        %p155 = scmp.lt.s32.totalorder %s154, 31
        %s156 = scalar_select %p155, %s154, 31
        %s157 = smul.addr %s156, 4
        %s158 = scalar_lea.vmem %s1, %s157
        %p159 = pneg %p75
        %p160 = pneg %p72
        %p161 = pneg %p103
        %p162 = pneg %p100
        %s163 = sand.u32 %s90, 1
        %s164 = scalar_lea.sflag [#allocation3], %s163
        %s165 = sand.u32 %s90, 1
        %s166 = smul.addr %s165, 256
        %s167 = scalar_lea.vmem [#allocation2], %s166
        %s168 = smul.u32 16, %s20
        %p169 = scmp.lt.s32.totalorder %s168, 31
        %s170 = scalar_select %p169, %s168, 31
        %s171 = smul.addr %s170, 4
        %s172 = scalar_lea.vmem %s0, %s171
        %s173 = smul.u32 16, %s20
        %s174 = smul.u32 32, %s21
        %p175 = scmp.lt.s32.totalorder %s174, 31
        %s176 = scalar_select %p175, %s174, 31
        %s177 = smul.addr %s176, 4
        %s178 = scalar_lea.vmem %s1, %s177
        %s179 = smul.u32 32, %s21
        %s180 = smul.u32 16, %s20
        %s181 = smul.u32 2, %s21
        %v183 = vld [vmem:[%s172] sm:$0xf]
        %v184 = vld [vmem:[%s172 + $0x4] sm:$0xf]
        %v185 = vld [vmem:[%s172 + $0x8] sm:$0xf]
        %v186 = vld [vmem:[%s172 + $0xc] sm:$0xf]
        %v187 = vld [vmem:[%s172 + $0x10] sm:$0xf]
        %v188 = vld [vmem:[%s172 + $0x14] sm:$0xf]
        %v189 = vld [vmem:[%s172 + $0x18] sm:$0xf]
        %v190 = vld [vmem:[%s172 + $0x1c] sm:$0xf]
        %v191 = vld [vmem:[%s172 + $0x20] sm:$0xf]
        %v192 = vld [vmem:[%s172 + $0x24] sm:$0xf]
        %v193 = vld [vmem:[%s172 + $0x28] sm:$0xf]
        %v194 = vld [vmem:[%s172 + $0x2c] sm:$0xf]
        %v195 = vld [vmem:[%s172 + $0x30] sm:$0xf]
        %v196 = vld [vmem:[%s172 + $0x34] sm:$0xf]
        %v197 = vld [vmem:[%s172 + $0x38] sm:$0xf]
        %v198 = vld [vmem:[%s172 + $0x3c] sm:$0xf]
        %v199 = vld [vmem:[%s178] sm:$0xf]
        %v200 = vld [vmem:[%s178 + $0x4] sm:$0xf]
        %v201 = vld [vmem:[%s178 + $0x8] sm:$0xf]
        %v202 = vld [vmem:[%s178 + $0xc] sm:$0xf]
        %v203 = vld [vmem:[%s178 + $0x10] sm:$0xf]
        %v204 = vld [vmem:[%s178 + $0x14] sm:$0xf]
        %v205 = vld [vmem:[%s178 + $0x18] sm:$0xf]
        %v206 = vld [vmem:[%s178 + $0x1c] sm:$0xf]
        %v207 = vld [vmem:[%s178 + $0x20] sm:$0xf]
        %v208 = vld [vmem:[%s178 + $0x24] sm:$0xf]
        %v209 = vld [vmem:[%s178 + $0x28] sm:$0xf]
        %v210 = vld [vmem:[%s178 + $0x2c] sm:$0xf]
        %v211 = vld [vmem:[%s178 + $0x30] sm:$0xf]
        %v212 = vld [vmem:[%s178 + $0x34] sm:$0xf]
        %v213 = vld [vmem:[%s178 + $0x38] sm:$0xf]
        %v214 = vld [vmem:[%s178 + $0x3c] sm:$0xf]
        %v215 = vld [vmem:[%s178 + $0x40] sm:$0xf]
        %v216 = vld [vmem:[%s178 + $0x44] sm:$0xf]
        %v217 = vld [vmem:[%s178 + $0x48] sm:$0xf]
        %v218 = vld [vmem:[%s178 + $0x4c] sm:$0xf]
        %v219 = vld [vmem:[%s178 + $0x50] sm:$0xf]
        %v220 = vld [vmem:[%s178 + $0x54] sm:$0xf]
        %v221 = vld [vmem:[%s178 + $0x58] sm:$0xf]
        %v222 = vld [vmem:[%s178 + $0x5c] sm:$0xf]
        %v223 = vld [vmem:[%s178 + $0x60] sm:$0xf]
        %v224 = vld [vmem:[%s178 + $0x64] sm:$0xf]
        %v225 = vld [vmem:[%s178 + $0x68] sm:$0xf]
        %v226 = vld [vmem:[%s178 + $0x6c] sm:$0xf]
        %v227 = vld [vmem:[%s178 + $0x70] sm:$0xf]
        %v228 = vld [vmem:[%s178 + $0x74] sm:$0xf]
        %v229 = vld [vmem:[%s178 + $0x78] sm:$0xf]
        %v230 = vld [vmem:[%s178 + $0x7c] sm:$0xf]
        %v247 = vunpack.c.l.b16 %v183
        %v248 = vunpack.c.l.b16 %v184
        %v249 = vunpack.c.l.b16 %v185
        %v250 = vunpack.c.l.b16 %v186
        %v251 = vunpack.c.l.b16 %v187
        %v252 = vunpack.c.l.b16 %v188
        %v253 = vunpack.c.l.b16 %v189
        %v254 = vunpack.c.l.b16 %v190
        %v255 = vunpack.c.l.b16 %v191
        %v256 = vunpack.c.l.b16 %v192
        %v257 = vunpack.c.l.b16 %v193
        %v258 = vunpack.c.l.b16 %v194
        %v259 = vunpack.c.l.b16 %v195
        %v260 = vunpack.c.l.b16 %v196
        %v261 = vunpack.c.l.b16 %v197
        %v262 = vunpack.c.l.b16 %v198
        %v263 = vpack.c.b16 %v248, %v247
        %v264 = vpack.c.b16 %v250, %v249
        %v265 = vpack.c.b16 %v252, %v251
        %v266 = vpack.c.b16 %v254, %v253
        %v267 = vpack.c.b16 %v256, %v255
        %v268 = vpack.c.b16 %v258, %v257
        %v269 = vpack.c.b16 %v260, %v259
        %v270 = vpack.c.b16 %v262, %v261
        %v303 = vunpack.c.l.b16 %v199
        %v304 = vunpack.c.l.b16 %v200
        %v305 = vunpack.c.l.b16 %v201
        %v306 = vunpack.c.l.b16 %v202
        %v307 = vunpack.c.l.b16 %v203
        %v308 = vunpack.c.l.b16 %v204
        %v309 = vunpack.c.l.b16 %v205
        %v310 = vunpack.c.l.b16 %v206
        %v311 = vunpack.c.l.b16 %v207
        %v312 = vunpack.c.l.b16 %v208
        %v313 = vunpack.c.l.b16 %v209
        %v314 = vunpack.c.l.b16 %v210
        %v315 = vunpack.c.l.b16 %v211
        %v316 = vunpack.c.l.b16 %v212
        %v317 = vunpack.c.l.b16 %v213
        %v318 = vunpack.c.l.b16 %v214
        %v319 = vunpack.c.l.b16 %v215
        %v320 = vunpack.c.l.b16 %v216
        %v321 = vunpack.c.l.b16 %v217
        %v322 = vunpack.c.l.b16 %v218
        %v323 = vunpack.c.l.b16 %v219
        %v324 = vunpack.c.l.b16 %v220
        %v325 = vunpack.c.l.b16 %v221
        %v326 = vunpack.c.l.b16 %v222
        %v327 = vunpack.c.l.b16 %v223
        %v328 = vunpack.c.l.b16 %v224
        %v329 = vunpack.c.l.b16 %v225
        %v330 = vunpack.c.l.b16 %v226
        %v331 = vunpack.c.l.b16 %v227
        %v332 = vunpack.c.l.b16 %v228
        %v333 = vunpack.c.l.b16 %v229
        %v334 = vunpack.c.l.b16 %v230
        %v335 = vpack.c.b16 %v304, %v303
        %v336 = vpack.c.b16 %v306, %v305
        %v337 = vpack.c.b16 %v308, %v307
        %v338 = vpack.c.b16 %v310, %v309
        %v339 = vpack.c.b16 %v312, %v311
        %v340 = vpack.c.b16 %v314, %v313
        %v341 = vpack.c.b16 %v316, %v315
        %v342 = vpack.c.b16 %v318, %v317
        %v343 = vpack.c.b16 %v320, %v319
        %v344 = vpack.c.b16 %v322, %v321
        %v345 = vpack.c.b16 %v324, %v323
        %v346 = vpack.c.b16 %v326, %v325
        %v347 = vpack.c.b16 %v328, %v327
        %v348 = vpack.c.b16 %v330, %v329
        %v349 = vpack.c.b16 %v332, %v331
        %v350 = vpack.c.b16 %v334, %v333
        %vm351 = vcmask 261120
        %v353 = vsel %vm351, %v263, 0
        %v356 = vsel %vm351, %v264, 0
        %v359 = vsel %vm351, %v265, 0
        %v362 = vsel %vm351, %v266, 0
        %v365 = vsel %vm351, %v267, 0
        %v368 = vsel %vm351, %v268, 0
        %v371 = vsel %vm351, %v269, 0
        %v374 = vsel %vm351, %v270, 0
        %v377 = vsel %vm351, %v335, 0
        %v380 = vsel %vm351, %v336, 0
        %v383 = vsel %vm351, %v337, 0
        %v386 = vsel %vm351, %v338, 0
        %v389 = vsel %vm351, %v339, 0
        %v392 = vsel %vm351, %v340, 0
        %v395 = vsel %vm351, %v341, 0
        %v398 = vsel %vm351, %v342, 0
        %v401 = vsel %vm351, %v343, 0
        %v404 = vsel %vm351, %v344, 0
        %v407 = vsel %vm351, %v345, 0
        %v410 = vsel %vm351, %v346, 0
        %v413 = vsel %vm351, %v347, 0
        %v416 = vsel %vm351, %v348, 0
        %v419 = vsel %vm351, %v349, 0
        %v422 = vsel %vm351, %v350, 0
        %424 = vmatprep.subr.bf16.mxu0 0
        %425 = vmatpush1.bf16.xpose.msra.mxu0 %v377
        %426 = vmatprep.subr.bf16.mxu0 0
        %427 = vmatpush1.bf16.xpose.msra.mxu0 %v380
        %428 = vmatprep.subr.bf16.mxu0 0
        %429 = vmatpush1.bf16.xpose.msra.mxu0 %v383
        %430 = vmatprep.subr.bf16.mxu0 0
        %431 = vmatpush1.bf16.xpose.msra.mxu0 %v386
        %432 = vmatprep.subr.bf16.mxu0 0
        %433 = vmatpush1.bf16.xpose.msra.mxu0 %v389
        %434 = vmatprep.subr.bf16.mxu0 0
        %435 = vmatpush1.bf16.xpose.msra.mxu0 %v392
        %436 = vmatprep.subr.bf16.mxu0 0
        %437 = vmatpush1.bf16.xpose.msra.mxu0 %v395
        %438 = vmatprep.subr.bf16.mxu0 0
        %439 = vmatpush1.bf16.xpose.msra.mxu0 %v398
        %440 = vmatprep.subr.bf16.mxu0 0
        %441 = vmatpush1.bf16.xpose.msra.mxu0 %v401
        %442 = vmatprep.subr.bf16.mxu0 0
        %443 = vmatpush1.bf16.xpose.msra.mxu0 %v404
        %444 = vmatprep.subr.bf16.mxu0 0
        %445 = vmatpush1.bf16.xpose.msra.mxu0 %v407
        %446 = vmatprep.subr.bf16.mxu0 0
        %447 = vmatpush1.bf16.xpose.msra.mxu0 %v410
        %448 = vmatprep.subr.bf16.mxu0 0
        %449 = vmatpush1.bf16.xpose.msra.mxu0 %v413
        %450 = vmatprep.subr.bf16.mxu0 0
        %451 = vmatpush1.bf16.xpose.msra.mxu0 %v416
        %452 = vmatprep.subr.bf16.mxu0 0
        %453 = vmatpush1.bf16.xpose.msra.mxu0 %v419
        %454 = vmatprep.subr.bf16.mxu0 0
        %455 = vmatpush1.bf16.xpose.msra.mxu0 %v422
        %456 = vmatprep.mubr.bf16.mxu0 0
        %457 = vmatmul.mubr.bf16.gmra.mrb[0].mxu0 %v353
        %v458 = vpop.f32.mrb[0].mxu0
        %v459 = vadd.f32 0.0, %v458
        %v460 = vpop.f32.mrb[0].mxu0
        %v461 = vadd.f32 0.0, %v460
        %v462 = vpop.f32.mrb[0].mxu0
        %v463 = vadd.f32 0.0, %v462
        %v464 = vpop.f32.mrb[0].mxu0
        %v465 = vadd.f32 0.0, %v464
        %466 = vmatprep.mubr.bf16.mxu0 0
        %467 = vmatmul.mubr.bf16.gmra.mrb[0].mxu0 %v356
        %v468 = vpop.f32.mrb[0].mxu0
        %v469 = vadd.f32 0.0, %v468
        %v470 = vpop.f32.mrb[0].mxu0
        %v471 = vadd.f32 0.0, %v470
        %v472 = vpop.f32.mrb[0].mxu0
        %v473 = vadd.f32 0.0, %v472
        %v474 = vpop.f32.mrb[0].mxu0
        %v475 = vadd.f32 0.0, %v474
        %476 = vmatprep.mubr.bf16.mxu0 0
        %477 = vmatmul.mubr.bf16.gmra.mrb[0].mxu0 %v359
        %v478 = vpop.f32.mrb[0].mxu0
        %v479 = vadd.f32 0.0, %v478
        %v480 = vpop.f32.mrb[0].mxu0
        %v481 = vadd.f32 0.0, %v480
        %v482 = vpop.f32.mrb[0].mxu0
        %v483 = vadd.f32 0.0, %v482
        %v484 = vpop.f32.mrb[0].mxu0
        %v485 = vadd.f32 0.0, %v484
        %486 = vmatprep.mubr.bf16.mxu0 0
        %487 = vmatmul.mubr.bf16.gmra.mrb[0].mxu0 %v362
        %v488 = vpop.f32.mrb[0].mxu0
        %v489 = vadd.f32 0.0, %v488
        %v490 = vpop.f32.mrb[0].mxu0
        %v491 = vadd.f32 0.0, %v490
        %v492 = vpop.f32.mrb[0].mxu0
        %v493 = vadd.f32 0.0, %v492
        %v494 = vpop.f32.mrb[0].mxu0
        %v495 = vadd.f32 0.0, %v494
        %496 = vmatprep.mubr.bf16.mxu0 0
        %497 = vmatmul.mubr.bf16.gmra.mrb[0].mxu0 %v365
        %v498 = vpop.f32.mrb[0].mxu0
        %v499 = vadd.f32 0.0, %v498
        %v500 = vpop.f32.mrb[0].mxu0
        %v501 = vadd.f32 0.0, %v500
        %v502 = vpop.f32.mrb[0].mxu0
        %v503 = vadd.f32 0.0, %v502
        %v504 = vpop.f32.mrb[0].mxu0
        %v505 = vadd.f32 0.0, %v504
        %506 = vmatprep.mubr.bf16.mxu0 0
        %507 = vmatmul.mubr.bf16.gmra.mrb[0].mxu0 %v368
        %v508 = vpop.f32.mrb[0].mxu0
        %v509 = vadd.f32 0.0, %v508
        %v510 = vpop.f32.mrb[0].mxu0
        %v511 = vadd.f32 0.0, %v510
        %v512 = vpop.f32.mrb[0].mxu0
        %v513 = vadd.f32 0.0, %v512
        %v514 = vpop.f32.mrb[0].mxu0
        %v515 = vadd.f32 0.0, %v514
        %516 = vmatprep.mubr.bf16.mxu0 0
        %517 = vmatmul.mubr.bf16.gmra.mrb[0].mxu0 %v371
        %v518 = vpop.f32.mrb[0].mxu0
        %v519 = vadd.f32 0.0, %v518
        %v520 = vpop.f32.mrb[0].mxu0
        %v521 = vadd.f32 0.0, %v520
        %v522 = vpop.f32.mrb[0].mxu0
        %v523 = vadd.f32 0.0, %v522
        %v524 = vpop.f32.mrb[0].mxu0
        %v525 = vadd.f32 0.0, %v524
        %526 = vmatprep.mubr.bf16.mxu0 0
        %527 = vmatmul.mubr.bf16.gmra.mrb[0].mxu0 %v374
        %v528 = vpop.f32.mrb[0].mxu0
        %v529 = vadd.f32 0.0, %v528
        %v530 = vpop.f32.mrb[0].mxu0
        %v531 = vadd.f32 0.0, %v530
        %v532 = vpop.f32.mrb[0].mxu0
        %v533 = vadd.f32 0.0, %v532
        %v534 = vpop.f32.mrb[0].mxu0
        %v535 = vadd.f32 0.0, %v534
        %536 = vdwg.mxu0
        %537 = vst [vmem:[%s167] sm:$0xff] %v459
        %538 = vst [vmem:[%s167 + $0x8] sm:$0xff] %v461
        %539 = vst [vmem:[%s167 + $0x10] sm:$0xff] %v463
        %540 = vst [vmem:[%s167 + $0x18] sm:$0xff] %v465
        %541 = vst [vmem:[%s167 + $0x20] sm:$0xff] %v469
        %542 = vst [vmem:[%s167 + $0x28] sm:$0xff] %v471
        %543 = vst [vmem:[%s167 + $0x30] sm:$0xff] %v473
        %544 = vst [vmem:[%s167 + $0x38] sm:$0xff] %v475
        %545 = vst [vmem:[%s167 + $0x40] sm:$0xff] %v479
        %546 = vst [vmem:[%s167 + $0x48] sm:$0xff] %v481
        %547 = vst [vmem:[%s167 + $0x50] sm:$0xff] %v483
        %548 = vst [vmem:[%s167 + $0x58] sm:$0xff] %v485
        %549 = vst [vmem:[%s167 + $0x60] sm:$0xff] %v489
        %550 = vst [vmem:[%s167 + $0x68] sm:$0xff] %v491
        %551 = vst [vmem:[%s167 + $0x70] sm:$0xff] %v493
        %552 = vst [vmem:[%s167 + $0x78] sm:$0xff] %v495
        %553 = vst [vmem:[%s167 + $0x80] sm:$0xff] %v499
        %554 = vst [vmem:[%s167 + $0x88] sm:$0xff] %v501
        %555 = vst [vmem:[%s167 + $0x90] sm:$0xff] %v503
        %556 = vst [vmem:[%s167 + $0x98] sm:$0xff] %v505
        %557 = vst [vmem:[%s167 + $0xa0] sm:$0xff] %v509
        %558 = vst [vmem:[%s167 + $0xa8] sm:$0xff] %v511
        %559 = vst [vmem:[%s167 + $0xb0] sm:$0xff] %v513
        %560 = vst [vmem:[%s167 + $0xb8] sm:$0xff] %v515
        %561 = vst [vmem:[%s167 + $0xc0] sm:$0xff] %v519
        %562 = vst [vmem:[%s167 + $0xc8] sm:$0xff] %v521
        %563 = vst [vmem:[%s167 + $0xd0] sm:$0xff] %v523
        %564 = vst [vmem:[%s167 + $0xd8] sm:$0xff] %v525
        %565 = vst [vmem:[%s167 + $0xe0] sm:$0xff] %v529
        %566 = vst [vmem:[%s167 + $0xe8] sm:$0xff] %v531
        %567 = vst [vmem:[%s167 + $0xf0] sm:$0xff] %v533
        %568 = vst [vmem:[%s167 + $0xf8] sm:$0xff] %v535
        %s569 = sand.u32 %s90, 1
        %s570 = scalar_lea.sflag [#allocation3], %s569
        %s571 = sand.u32 %s90, 1
        %s572 = smul.addr %s571, 256
        %s573 = scalar_lea.vmem [#allocation2], %s572
        // Predicated region
        $region29: #{gcn_vaecd_forward.5} parent=27 // pred_check
          %p574 = pneg %p100
        $region30: #{gcn_vaecd_forward.5} parent=27 // pred_check_branch
          %576 = sbr.rel (%p574) target = $region32
        $region31: #{gcn_vaecd_forward.5} parent=27 // pred_region
          %s577 = smul.u32 16, %s20
          %s578 = smul.u32 2, %s21
          %s580 = ssub.s32 4096, 4096
          %581 = vsyncadd %s570, %s580
          %s582 = smul.addr %s577, 2
          %s583 = sadd.s32 %s578, %s582
          %s584 = smul.addr %s583, 128
          %s585 = scalar_lea.hbm %s2, %s584
          %s586 = sshll.u32 %s573, 4
          %s587 = int_to_ptr.vmem [resolvable:$true] %s586
          %592 = dma.vmem_to_hbm [thread:$0]  %s587, 4096, %s585, %s570, 256, 256, 16
        $region32: #{gcn_vaecd_forward.5} parent=27 // pred_fallthru
          _
      $region28: #{gcn_vaecd_forward.5} parent=5 // pred_fallthru
        _
      %p593 = scmp.le.s32.totalorder 2, %s11
      // Predicated region
      $region33: #{gcn_vaecd_forward.5} parent=5 // pred_check
        %p594 = pneg %p593
      $region34: #{gcn_vaecd_forward.5} parent=5 // pred_check_branch
        %596 = sbr.rel (%p594) target = $region36
      $region35: #{gcn_vaecd_forward.5} parent=5 // pred_region
        %s597 = ssub.s32 %s11, 2
        // Predicated region
        $region37: #{gcn_vaecd_forward.5} parent=35 // pred_check
          %p598 = pneg %p106
        $region38: #{gcn_vaecd_forward.5} parent=35 // pred_check_branch
          %600 = sbr.rel (%p598) target = $region40
        $region39: #{gcn_vaecd_forward.5} parent=35 // pred_region
          %s601 = sand.u32 %s91, 1
          %s602 = scalar_lea.sflag [#allocation3], %s601
          %s603 = sand.u32 %s91, 1
          %s604 = smul.addr %s603, 256
          %s605 = scalar_lea.vmem [#allocation2], %s604
          %606 = dma.done %s602, 4096
        $region40: #{gcn_vaecd_forward.5} parent=35 // pred_fallthru
          _
      $region36: #{gcn_vaecd_forward.5} parent=5 // pred_fallthru
        _
    $region6: #{gcn_vaecd_forward.5} parent=1 // loop_footer
      %s15 = sadd.s32 1, %s11
    $region7: #{gcn_vaecd_forward.5} parent=1 // loop_footer_branch
      %10 = sbr.rel target = $region3
    $region8: #{gcn_vaecd_forward.5} parent=1 // loop_exit
      _
    %607 = vsyncpa [#allocation3], 1
    %s608 = scalar_lea.sflag [#allocation3], 1
    %609 = vsyncpa %s608, 1

// kernel: gcn_vaecd_forward.3
$region0: #{gcn_vaecd_forward.3}
  #allocation0 [shape = 'u32[]', space=smem, size = 0x4, offset = 0x4, fixed_abs, tag = 'smem constant byte address 0x4 - core index']
  #allocation1 [shape = 'u32[144,128]{1,0:T(1,128)}', space=vmem, size = 0x12000, scoped, tag = 'internal scratch']
  #allocation2 [shape = 'f32[128,32]{1,0:T(8,128)}', space=vmem, size = 0x10000, scoped, tag = 'scratch operand']
  %s0 = inlined_call_operand.vmem [shape: bf16[256,256], index: 0, kind: input, shape index: {}]
  %s1 = inlined_call_operand.vmem [shape: bf16[256,32], index: 1, kind: input, shape index: {}]
  %s2 = inlined_call_operand.vmem [shape: bf16[32,64], index: 2, kind: input, shape index: {}]
  %s3 = inlined_call_operand.vmem [shape: bf16[256,64], index: 3, kind: output, shape index: {}]
  %s4 = sld [smem:[#allocation0]]
  $region53: #{gcn_vaecd_forward.3} parent=0
    _
  %s6 = ssub.s32 1, %s4
  %s7 = scalar_select 0, %s6, %s4
  loop: start=0, step=1, limit=4
  $region2: #{gcn_vaecd_forward.3} parent=0 // loop_pre_header
    _
  $region3: #{gcn_vaecd_forward.3} parent=0 // loop_header
    %s9 = sphi 0, %s13
    %p10 = scmp.ge.s32.totalorder %s9, 4
    %s16 = sphi 0, %s28
    %s17 = sphi 0, %s24
    %s18 = sphi 0, %s16
    %s19 = sphi 0, %s17
    %s20 = sphi 0, %s18
    %s21 = sphi 0, %s19
    %s33 = sphi 0, %s35
    %s36 = sphi 0, %s33
    %s37 = sphi 0, %s36
    %s53 = sphi 0, %s37
    %s59 = sphi 0, %s61
    %s62 = sphi 0, %s59
    %s63 = sphi 0, %s62
    %s79 = sphi 0, %s63
    %s83 = sphi 0, %s83
    %s85 = sphi 0, %s83
    %s86 = sphi 0, %s85
    %s100 = sphi 0, %s86
    %s106 = sphi 0, %s108
    %s109 = sphi 0, %s106
    %s110 = sphi 0, %s109
    %s126 = sphi 0, %s110
  $region4: #{gcn_vaecd_forward.3} parent=0 // loop_header_branch
    %12 = sbr.rel (%p10) target = $region8
  $region5: #{gcn_vaecd_forward.3} parent=0 // loop_body
    %s14 = ssub.s32 %s9, 1
    %s15 = ssub.s32 %s9, 2
    %s22 = sadd.s32 1, %s17
    %p23 = scmp.ge.s32.totalorder %s22, 1
    %s24 = scalar_select %p23, 0, %s22
    %s25 = sadd.s32 1, %s16
    %s26 = scalar_select %p23, %s25, %s16
    %p27 = scmp.ge.s32.totalorder %s26, 2
    %s28 = scalar_select %p27, 0, %s26
    %s29 = ssub.s32 %s16, %s28
    %s30 = ssub.s32 %s17, %s24
    %s31 = sor.u32 %s29, %s30
    %p32 = scmp.eq.s32.totalorder %s31, 0
    %s34 = sadd.s32 %s33, 1
    %s35 = scalar_select %p32, %s33, %s34
    %p38 = pneg %p32
    %p39 = scmp.eq.s32.totalorder %s9, 1
    %p40 = por %p38, %p39
    %p41 = scmp.ne.s32.totalorder %s33, %s36
    %p42 = scmp.eq.s32.totalorder %s9, 0
    %p43 = por %p41, %p42
    %p44 = scmp.ne.s32.totalorder %s33, %s36
    %p45 = scmp.eq.s32.totalorder %s14, 1
    %p46 = por %p44, %p45
    %p47 = scmp.ne.s32.totalorder %s36, %s37
    %p48 = scmp.eq.s32.totalorder %s14, 0
    %p49 = por %p47, %p48
    %p50 = scmp.ne.s32.totalorder %s36, %s37
    %p51 = scmp.eq.s32.totalorder %s15, 1
    %p52 = por %p50, %p51
    %p54 = scmp.ne.s32.totalorder %s37, %s53
    %p55 = scmp.eq.s32.totalorder %s15, 0
    %p56 = por %p54, %p55
    %s57 = ssub.s32 %s17, %s24
    %p58 = scmp.eq.s32.totalorder %s57, 0
    %s60 = sadd.s32 %s59, 1
    %s61 = scalar_select %p58, %s59, %s60
    %p64 = pneg %p58
    %p65 = scmp.eq.s32.totalorder %s9, 1
    %p66 = por %p64, %p65
    %p67 = scmp.ne.s32.totalorder %s59, %s62
    %p68 = scmp.eq.s32.totalorder %s9, 0
    %p69 = por %p67, %p68
    %p70 = scmp.ne.s32.totalorder %s59, %s62
    %p71 = scmp.eq.s32.totalorder %s14, 1
    %p72 = por %p70, %p71
    %p73 = scmp.ne.s32.totalorder %s62, %s63
    %p74 = scmp.eq.s32.totalorder %s14, 0
    %p75 = por %p73, %p74
    %p76 = scmp.ne.s32.totalorder %s62, %s63
    %p77 = scmp.eq.s32.totalorder %s15, 1
    %p78 = por %p76, %p77
    %p80 = scmp.ne.s32.totalorder %s63, %s79
    %p81 = scmp.eq.s32.totalorder %s15, 0
    %p82 = por %p80, %p81
    %s84 = sadd.s32 %s83, 1
    %p87 = scmp.eq.s32.totalorder %s9, 1
    %p88 = scmp.ne.s32.totalorder %s83, %s85
    %p89 = scmp.eq.s32.totalorder %s9, 0
    %p90 = por %p88, %p89
    %p91 = scmp.ne.s32.totalorder %s83, %s85
    %p92 = scmp.eq.s32.totalorder %s14, 1
    %p93 = por %p91, %p92
    %p94 = scmp.ne.s32.totalorder %s85, %s86
    %p95 = scmp.eq.s32.totalorder %s14, 0
    %p96 = por %p94, %p95
    %p97 = scmp.ne.s32.totalorder %s85, %s86
    %p98 = scmp.eq.s32.totalorder %s15, 1
    %p99 = por %p97, %p98
    %p101 = scmp.ne.s32.totalorder %s86, %s100
    %p102 = scmp.eq.s32.totalorder %s15, 0
    %p103 = por %p101, %p102
    %s104 = ssub.s32 %s16, %s28
    %p105 = scmp.eq.s32.totalorder %s104, 0
    %s107 = sadd.s32 %s106, 1
    %s108 = scalar_select %p105, %s106, %s107
    %p111 = pneg %p105
    %p112 = scmp.eq.s32.totalorder %s9, 1
    %p113 = por %p111, %p112
    %p114 = scmp.ne.s32.totalorder %s106, %s109
    %p115 = scmp.eq.s32.totalorder %s9, 0
    %p116 = por %p114, %p115
    %p117 = scmp.ne.s32.totalorder %s106, %s109
    %p118 = scmp.eq.s32.totalorder %s14, 1
    %p119 = por %p117, %p118
    %p120 = scmp.ne.s32.totalorder %s109, %s110
    %p121 = scmp.eq.s32.totalorder %s14, 0
    %p122 = por %p120, %p121
    %p123 = scmp.ne.s32.totalorder %s109, %s110
    %p124 = scmp.eq.s32.totalorder %s15, 1
    %p125 = por %p123, %p124
    %p127 = scmp.ne.s32.totalorder %s110, %s126
    %p128 = scmp.eq.s32.totalorder %s15, 0
    %p129 = por %p127, %p128
    %p130 = scmp.le.s32.totalorder 1, %s9
    %p131 = scmp.lt.s32.totalorder %s9, 3
    %p132 = pnand %p130, %p131
    %p133 = pneg %p132
    // Predicated region
    $region9: #{gcn_vaecd_forward.3} parent=5 // pred_check
      _
    $region10: #{gcn_vaecd_forward.3} parent=5 // pred_check_branch
      %135 = sbr.rel (%p132) target = $region12
    $region11: #{gcn_vaecd_forward.3} parent=5 // pred_region
      %s136 = ssub.s32 %s9, 1
      // Predicated region
      $region13: #{gcn_vaecd_forward.3} parent=11 // pred_check
        %p137 = pneg %p75
      $region14: #{gcn_vaecd_forward.3} parent=11 // pred_check_branch
        %139 = sbr.rel (%p137) target = $region16
      $region15: #{gcn_vaecd_forward.3} parent=11 // pred_region
        %s140 = smul.u32 32, %s19
        %p141 = scmp.lt.s32.totalorder %s140, 31
        %s142 = scalar_select %p141, %s140, 31
        %s143 = smul.addr %s142, 4
        %s144 = scalar_lea.vmem %s1, %s143
        %s145 = smul.u32 32, %s19
      $region16: #{gcn_vaecd_forward.3} parent=11 // pred_fallthru
        _
      // Predicated region
      $region17: #{gcn_vaecd_forward.3} parent=11 // pred_check
        %p146 = pneg %p96
      $region18: #{gcn_vaecd_forward.3} parent=11 // pred_check_branch
        %148 = sbr.rel (%p146) target = $region20
      $region19: #{gcn_vaecd_forward.3} parent=11 // pred_region
        _
      $region20: #{gcn_vaecd_forward.3} parent=11 // pred_fallthru
        _
    $region12: #{gcn_vaecd_forward.3} parent=5 // pred_fallthru
      _
    %p149 = scmp.lt.s32.totalorder %s9, 2
    // Predicated region
    $region21: #{gcn_vaecd_forward.3} parent=5 // pred_check
      %p150 = pneg %p149
    $region22: #{gcn_vaecd_forward.3} parent=5 // pred_check_branch
      %152 = sbr.rel (%p150) target = $region24
    $region23: #{gcn_vaecd_forward.3} parent=5 // pred_region
      // Predicated region
      $region25: #{gcn_vaecd_forward.3} parent=23 // pred_check
        %p153 = pneg %p43
      $region26: #{gcn_vaecd_forward.3} parent=23 // pred_check_branch
        %155 = sbr.rel (%p153) target = $region28
      $region27: #{gcn_vaecd_forward.3} parent=23 // pred_region
        %s156 = smul.u32 16, %s16
        %s157 = smul.u32 2, %s17
        %p158 = scmp.lt.s32.totalorder %s156, 31
        %s159 = scalar_select %p158, %s156, 31
        %p160 = scmp.lt.s32.totalorder %s157, 1
        %s161 = scalar_select %p160, %s157, 1
        %s162 = smul.addr %s159, 2
        %s163 = sadd.s32 %s161, %s162
        %s164 = smul.addr %s163, 4
        %s165 = scalar_lea.vmem %s0, %s164
        %s166 = smul.u32 16, %s16
        %s167 = smul.u32 2, %s17
      $region28: #{gcn_vaecd_forward.3} parent=23 // pred_fallthru
        _
    $region24: #{gcn_vaecd_forward.3} parent=5 // pred_fallthru
      _
    %p168 = scmp.le.s32.totalorder 1, %s9
    %p169 = scmp.lt.s32.totalorder %s9, 3
    %p170 = pnand %p168, %p169
    %p171 = pneg %p170
    // Predicated region
    $region29: #{gcn_vaecd_forward.3} parent=5 // pred_check
      _
    $region30: #{gcn_vaecd_forward.3} parent=5 // pred_check_branch
      %173 = sbr.rel (%p170) target = $region32
    $region31: #{gcn_vaecd_forward.3} parent=5 // pred_region
      %s174 = ssub.s32 %s9, 1
      %s175 = smul.u32 16, %s18
      %s176 = smul.u32 2, %s19
      %p177 = scmp.lt.s32.totalorder %s175, 31
      %s178 = scalar_select %p177, %s175, 31
      %p179 = scmp.lt.s32.totalorder %s176, 1
      %s180 = scalar_select %p179, %s176, 1
      %s181 = smul.addr %s178, 2
      %s182 = sadd.s32 %s180, %s181
      %s183 = smul.addr %s182, 4
      %s184 = scalar_lea.vmem %s0, %s183
      %p185 = pneg %p49
      %p186 = pneg %p46
      %s187 = smul.u32 32, %s19
      %p188 = scmp.lt.s32.totalorder %s187, 31
      %s189 = scalar_select %p188, %s187, 31
      %s190 = smul.addr %s189, 4
      %s191 = scalar_lea.vmem %s1, %s190
      %p192 = pneg %p75
      %p193 = pneg %p72
      %p194 = pneg %p96
      %p195 = pneg %p93
      %p196 = pneg %p122
      %p197 = pneg %p119
      %s198 = smul.u32 16, %s18
      %p199 = scmp.lt.s32.totalorder %s198, 31
      %s200 = scalar_select %p199, %s198, 31
      %s201 = smul.addr %s200, 4
      %s202 = scalar_lea.vmem %s3, %s201
      %s203 = smul.u32 16, %s18
      %s204 = smul.u32 2, %s19
      %p205 = scmp.lt.s32.totalorder %s203, 31
      %s206 = scalar_select %p205, %s203, 31
      %p207 = scmp.lt.s32.totalorder %s204, 1
      %s208 = scalar_select %p207, %s204, 1
      %s209 = smul.addr %s206, 2
      %s210 = sadd.s32 %s208, %s209
      %s211 = smul.addr %s210, 4
      %s212 = scalar_lea.vmem %s0, %s211
      %s213 = smul.u32 16, %s18
      %s214 = smul.u32 2, %s19
      %s215 = smul.u32 32, %s19
      %p216 = scmp.lt.s32.totalorder %s215, 31
      %s217 = scalar_select %p216, %s215, 31
      %s218 = smul.addr %s217, 4
      %s219 = scalar_lea.vmem %s1, %s218
      %s220 = smul.u32 32, %s19
      %s221 = smul.u32 16, %s18
      %p222 = scmp.lt.s32.totalorder %s221, 31
      %s223 = scalar_select %p222, %s221, 31
      %s224 = smul.addr %s223, 4
      %s225 = scalar_lea.vmem %s3, %s224
      %s226 = smul.u32 16, %s18
      %p228 = scmp.eq.s32.totalorder %s19, 0
      // Predicated region
      $region33: #{gcn_vaecd_forward.3} parent=31 // pred_check
        %p229 = pneg %p228
      $region34: #{gcn_vaecd_forward.3} parent=31 // pred_check_branch
        %231 = sbr.rel (%p229) target = $region36
      $region35: #{gcn_vaecd_forward.3} parent=31 // pred_region
        %vm232 = vcmask 261120
        %233 = vst.msk [vmem:[#allocation2] sm:$0xff] %vm232, 0.0
        %234 = vst.msk [vmem:[#allocation2 + $0x8] sm:$0xff] %vm232, 0.0
        %235 = vst.msk [vmem:[#allocation2 + $0x10] sm:$0xff] %vm232, 0.0
        %236 = vst.msk [vmem:[#allocation2 + $0x18] sm:$0xff] %vm232, 0.0
        %237 = vst.msk [vmem:[#allocation2 + $0x20] sm:$0xff] %vm232, 0.0
        %238 = vst.msk [vmem:[#allocation2 + $0x28] sm:$0xff] %vm232, 0.0
        %239 = vst.msk [vmem:[#allocation2 + $0x30] sm:$0xff] %vm232, 0.0
        %240 = vst.msk [vmem:[#allocation2 + $0x38] sm:$0xff] %vm232, 0.0
        %241 = vst.msk [vmem:[#allocation2 + $0x40] sm:$0xff] %vm232, 0.0
        %242 = vst.msk [vmem:[#allocation2 + $0x48] sm:$0xff] %vm232, 0.0
        %243 = vst.msk [vmem:[#allocation2 + $0x50] sm:$0xff] %vm232, 0.0
        %244 = vst.msk [vmem:[#allocation2 + $0x58] sm:$0xff] %vm232, 0.0
        %245 = vst.msk [vmem:[#allocation2 + $0x60] sm:$0xff] %vm232, 0.0
        %246 = vst.msk [vmem:[#allocation2 + $0x68] sm:$0xff] %vm232, 0.0
        %247 = vst.msk [vmem:[#allocation2 + $0x70] sm:$0xff] %vm232, 0.0
        %248 = vst.msk [vmem:[#allocation2 + $0x78] sm:$0xff] %vm232, 0.0
      $region36: #{gcn_vaecd_forward.3} parent=31 // pred_fallthru
        _
      %v249 = vld [vmem:[#allocation2] sm:$0xff]
      %v250 = vld [vmem:[#allocation2 + $0x8] sm:$0xff]
      %v251 = vld [vmem:[#allocation2 + $0x10] sm:$0xff]
      %v252 = vld [vmem:[#allocation2 + $0x18] sm:$0xff]
      %v253 = vld [vmem:[#allocation2 + $0x20] sm:$0xff]
      %v254 = vld [vmem:[#allocation2 + $0x28] sm:$0xff]
      %v255 = vld [vmem:[#allocation2 + $0x30] sm:$0xff]
      %v256 = vld [vmem:[#allocation2 + $0x38] sm:$0xff]
      %v257 = vld [vmem:[#allocation2 + $0x40] sm:$0xff]
      %v258 = vld [vmem:[#allocation2 + $0x48] sm:$0xff]
      %v259 = vld [vmem:[#allocation2 + $0x50] sm:$0xff]
      %v260 = vld [vmem:[#allocation2 + $0x58] sm:$0xff]
      %v261 = vld [vmem:[#allocation2 + $0x60] sm:$0xff]
      %v262 = vld [vmem:[#allocation2 + $0x68] sm:$0xff]
      %v263 = vld [vmem:[#allocation2 + $0x70] sm:$0xff]
      %v264 = vld [vmem:[#allocation2 + $0x78] sm:$0xff]
      %v265 = vld [vmem:[%s212] sm:$0xff]
      %v266 = vld [vmem:[%s212 + $0x8] sm:$0xff]
      %v267 = vld [vmem:[%s212 + $0x10] sm:$0xff]
      %v268 = vld [vmem:[%s212 + $0x18] sm:$0xff]
      %v269 = vld [vmem:[%s212 + $0x20] sm:$0xff]
      %v270 = vld [vmem:[%s212 + $0x28] sm:$0xff]
      %v271 = vld [vmem:[%s212 + $0x30] sm:$0xff]
      %v272 = vld [vmem:[%s212 + $0x38] sm:$0xff]
      %v273 = vld [vmem:[%s212 + $0x40] sm:$0xff]
      %v274 = vld [vmem:[%s212 + $0x48] sm:$0xff]
      %v275 = vld [vmem:[%s212 + $0x50] sm:$0xff]
      %v276 = vld [vmem:[%s212 + $0x58] sm:$0xff]
      %v277 = vld [vmem:[%s212 + $0x60] sm:$0xff]
      %v278 = vld [vmem:[%s212 + $0x68] sm:$0xff]
      %v279 = vld [vmem:[%s212 + $0x70] sm:$0xff]
      %v280 = vld [vmem:[%s212 + $0x78] sm:$0xff]
      %v281 = vld [vmem:[%s219] sm:$0xf]
      %v282 = vld [vmem:[%s219 + $0x4] sm:$0xf]
      %v283 = vld [vmem:[%s219 + $0x8] sm:$0xf]
      %v284 = vld [vmem:[%s219 + $0xc] sm:$0xf]
      %v285 = vld [vmem:[%s219 + $0x10] sm:$0xf]
      %v286 = vld [vmem:[%s219 + $0x14] sm:$0xf]
      %v287 = vld [vmem:[%s219 + $0x18] sm:$0xf]
      %v288 = vld [vmem:[%s219 + $0x1c] sm:$0xf]
      %v289 = vld [vmem:[%s219 + $0x20] sm:$0xf]
      %v290 = vld [vmem:[%s219 + $0x24] sm:$0xf]
      %v291 = vld [vmem:[%s219 + $0x28] sm:$0xf]
      %v292 = vld [vmem:[%s219 + $0x2c] sm:$0xf]
      %v293 = vld [vmem:[%s219 + $0x30] sm:$0xf]
      %v294 = vld [vmem:[%s219 + $0x34] sm:$0xf]
      %v295 = vld [vmem:[%s219 + $0x38] sm:$0xf]
      %v296 = vld [vmem:[%s219 + $0x3c] sm:$0xf]
      %v297 = vld [vmem:[%s219 + $0x40] sm:$0xf]
      %v298 = vld [vmem:[%s219 + $0x44] sm:$0xf]
      %v299 = vld [vmem:[%s219 + $0x48] sm:$0xf]
      %v300 = vld [vmem:[%s219 + $0x4c] sm:$0xf]
      %v301 = vld [vmem:[%s219 + $0x50] sm:$0xf]
      %v302 = vld [vmem:[%s219 + $0x54] sm:$0xf]
      %v303 = vld [vmem:[%s219 + $0x58] sm:$0xf]
      %v304 = vld [vmem:[%s219 + $0x5c] sm:$0xf]
      %v305 = vld [vmem:[%s219 + $0x60] sm:$0xf]
      %v306 = vld [vmem:[%s219 + $0x64] sm:$0xf]
      %v307 = vld [vmem:[%s219 + $0x68] sm:$0xf]
      %v308 = vld [vmem:[%s219 + $0x6c] sm:$0xf]
      %v309 = vld [vmem:[%s219 + $0x70] sm:$0xf]
      %v310 = vld [vmem:[%s219 + $0x74] sm:$0xf]
      %v311 = vld [vmem:[%s219 + $0x78] sm:$0xf]
      %v312 = vld [vmem:[%s219 + $0x7c] sm:$0xf]
      %v329 = vunpack.c.l.b16 %v265
      %v330 = vunpack.c.h.b16 %v265
      %v331 = vunpack.c.l.b16 %v266
      %v332 = vunpack.c.h.b16 %v266
      %v333 = vunpack.c.l.b16 %v267
      %v334 = vunpack.c.h.b16 %v267
      %v335 = vunpack.c.l.b16 %v268
      %v336 = vunpack.c.h.b16 %v268
      %v337 = vunpack.c.l.b16 %v269
      %v338 = vunpack.c.h.b16 %v269
      %v339 = vunpack.c.l.b16 %v270
      %v340 = vunpack.c.h.b16 %v270
      %v341 = vunpack.c.l.b16 %v271
      %v342 = vunpack.c.h.b16 %v271
      %v343 = vunpack.c.l.b16 %v272
      %v344 = vunpack.c.h.b16 %v272
      %v345 = vunpack.c.l.b16 %v273
      %v346 = vunpack.c.h.b16 %v273
      %v347 = vunpack.c.l.b16 %v274
      %v348 = vunpack.c.h.b16 %v274
      %v349 = vunpack.c.l.b16 %v275
      %v350 = vunpack.c.h.b16 %v275
      %v351 = vunpack.c.l.b16 %v276
      %v352 = vunpack.c.h.b16 %v276
      %v353 = vunpack.c.l.b16 %v277
      %v354 = vunpack.c.h.b16 %v277
      %v355 = vunpack.c.l.b16 %v278
      %v356 = vunpack.c.h.b16 %v278
      %v357 = vunpack.c.l.b16 %v279
      %v358 = vunpack.c.h.b16 %v279
      %v359 = vunpack.c.l.b16 %v280
      %v360 = vunpack.c.h.b16 %v280
      %v361 = vpack.c.b16 %v331, %v329
      %v362 = vpack.c.b16 %v332, %v330
      %v363 = vpack.c.b16 %v335, %v333
      %v364 = vpack.c.b16 %v336, %v334
      %v365 = vpack.c.b16 %v339, %v337
      %v366 = vpack.c.b16 %v340, %v338
      %v367 = vpack.c.b16 %v343, %v341
      %v368 = vpack.c.b16 %v344, %v342
      %v369 = vpack.c.b16 %v347, %v345
      %v370 = vpack.c.b16 %v348, %v346
      %v371 = vpack.c.b16 %v351, %v349
      %v372 = vpack.c.b16 %v352, %v350
      %v373 = vpack.c.b16 %v355, %v353
      %v374 = vpack.c.b16 %v356, %v354
      %v375 = vpack.c.b16 %v359, %v357
      %v376 = vpack.c.b16 %v360, %v358
      %v425 = vunpack.c.l.b16 %v281
      %v426 = vunpack.c.l.b16 %v282
      %v427 = vunpack.c.l.b16 %v283
      %v428 = vunpack.c.l.b16 %v284
      %v429 = vunpack.c.l.b16 %v285
      %v430 = vunpack.c.l.b16 %v286
      %v431 = vunpack.c.l.b16 %v287
      %v432 = vunpack.c.l.b16 %v288
      %v433 = vunpack.c.l.b16 %v289
      %v434 = vunpack.c.l.b16 %v290
      %v435 = vunpack.c.l.b16 %v291
      %v436 = vunpack.c.l.b16 %v292
      %v437 = vunpack.c.l.b16 %v293
      %v438 = vunpack.c.l.b16 %v294
      %v439 = vunpack.c.l.b16 %v295
      %v440 = vunpack.c.l.b16 %v296
      %v441 = vunpack.c.l.b16 %v297
      %v442 = vunpack.c.l.b16 %v298
      %v443 = vunpack.c.l.b16 %v299
      %v444 = vunpack.c.l.b16 %v300
      %v445 = vunpack.c.l.b16 %v301
      %v446 = vunpack.c.l.b16 %v302
      %v447 = vunpack.c.l.b16 %v303
      %v448 = vunpack.c.l.b16 %v304
      %v449 = vunpack.c.l.b16 %v305
      %v450 = vunpack.c.l.b16 %v306
      %v451 = vunpack.c.l.b16 %v307
      %v452 = vunpack.c.l.b16 %v308
      %v453 = vunpack.c.l.b16 %v309
      %v454 = vunpack.c.l.b16 %v310
      %v455 = vunpack.c.l.b16 %v311
      %v456 = vunpack.c.l.b16 %v312
      %v457 = vpack.c.b16 %v426, %v425
      %v458 = vpack.c.b16 %v428, %v427
      %v459 = vpack.c.b16 %v430, %v429
      %v460 = vpack.c.b16 %v432, %v431
      %v461 = vpack.c.b16 %v434, %v433
      %v462 = vpack.c.b16 %v436, %v435
      %v463 = vpack.c.b16 %v438, %v437
      %v464 = vpack.c.b16 %v440, %v439
      %v465 = vpack.c.b16 %v442, %v441
      %v466 = vpack.c.b16 %v444, %v443
      %v467 = vpack.c.b16 %v446, %v445
      %v468 = vpack.c.b16 %v448, %v447
      %v469 = vpack.c.b16 %v450, %v449
      %v470 = vpack.c.b16 %v452, %v451
      %v471 = vpack.c.b16 %v454, %v453
      %v472 = vpack.c.b16 %v456, %v455
      %489 = vmatprep.subr.bf16.mxu0 0
      %490 = vmatpush1.bf16.msra.mxu0 %v457
      %491 = vmatprep.subr.bf16.mxu0 0
      %492 = vmatpush1.bf16.msra.mxu0 %v458
      %493 = vmatprep.subr.bf16.mxu0 0
      %494 = vmatpush1.bf16.msra.mxu0 %v459
      %495 = vmatprep.subr.bf16.mxu0 0
      %496 = vmatpush1.bf16.msra.mxu0 %v460
      %497 = vmatprep.subr.bf16.mxu0 0
      %498 = vmatpush1.bf16.msra.mxu0 %v461
      %499 = vmatprep.subr.bf16.mxu0 0
      %500 = vmatpush1.bf16.msra.mxu0 %v462
      %501 = vmatprep.subr.bf16.mxu0 0
      %502 = vmatpush1.bf16.msra.mxu0 %v463
      %503 = vmatprep.subr.bf16.mxu0 0
      %504 = vmatpush1.bf16.msra.mxu0 %v464
      %505 = vmatprep.subr.bf16.mxu0 0
      %506 = vmatpush1.bf16.msra.mxu0 %v465
      %507 = vmatprep.subr.bf16.mxu0 0
      %508 = vmatpush1.bf16.msra.mxu0 %v466
      %509 = vmatprep.subr.bf16.mxu0 0
      %510 = vmatpush1.bf16.msra.mxu0 %v467
      %511 = vmatprep.subr.bf16.mxu0 0
      %512 = vmatpush1.bf16.msra.mxu0 %v468
      %513 = vmatprep.subr.bf16.mxu0 0
      %514 = vmatpush1.bf16.msra.mxu0 %v469
      %515 = vmatprep.subr.bf16.mxu0 0
      %516 = vmatpush1.bf16.msra.mxu0 %v470
      %517 = vmatprep.subr.bf16.mxu0 0
      %518 = vmatpush1.bf16.msra.mxu0 %v471
      %519 = vmatprep.subr.bf16.mxu0 0
      %520 = vmatpush1.bf16.msra.mxu0 %v472
      %521 = vmatprep.mubr.bf16.mxu0 %v362
      %522 = vmatmul.mubr.bf16.gmra.mrb[0].mxu0 %v361
      %v523 = vpop.f32.mrb[0].mxu0
      %v524 = vadd.f32 0.0, %v523
      %v525 = vpop.f32.mrb[0].mxu0
      %v526 = vpop.f32.mrb[0].mxu0
      %v527 = vadd.f32 0.0, %v526
      %v528 = vpop.f32.mrb[0].mxu0
      %529 = vmatprep.mubr.bf16.mxu0 %v364
      %530 = vmatmul.mubr.bf16.gmra.mrb[0].mxu0 %v363
      %v531 = vpop.f32.mrb[0].mxu0
      %v532 = vadd.f32 0.0, %v531
      %v533 = vpop.f32.mrb[0].mxu0
      %v534 = vpop.f32.mrb[0].mxu0
      %v535 = vadd.f32 0.0, %v534
      %v536 = vpop.f32.mrb[0].mxu0
      %537 = vmatprep.mubr.bf16.mxu0 %v366
      %538 = vmatmul.mubr.bf16.gmra.mrb[0].mxu0 %v365
      %v539 = vpop.f32.mrb[0].mxu0
      %v540 = vadd.f32 0.0, %v539
      %v541 = vpop.f32.mrb[0].mxu0
      %v542 = vpop.f32.mrb[0].mxu0
      %v543 = vadd.f32 0.0, %v542
      %v544 = vpop.f32.mrb[0].mxu0
      %545 = vmatprep.mubr.bf16.mxu0 %v368
      %546 = vmatmul.mubr.bf16.gmra.mrb[0].mxu0 %v367
      %v547 = vpop.f32.mrb[0].mxu0
      %v548 = vadd.f32 0.0, %v547
      %v549 = vpop.f32.mrb[0].mxu0
      %v550 = vpop.f32.mrb[0].mxu0
      %v551 = vadd.f32 0.0, %v550
      %v552 = vpop.f32.mrb[0].mxu0
      %553 = vmatprep.mubr.bf16.mxu0 %v370
      %554 = vmatmul.mubr.bf16.gmra.mrb[0].mxu0 %v369
      %v555 = vpop.f32.mrb[0].mxu0
      %v556 = vadd.f32 0.0, %v555
      %v557 = vpop.f32.mrb[0].mxu0
      %v558 = vpop.f32.mrb[0].mxu0
      %v559 = vadd.f32 0.0, %v558
      %v560 = vpop.f32.mrb[0].mxu0
      %561 = vmatprep.mubr.bf16.mxu0 %v372
      %562 = vmatmul.mubr.bf16.gmra.mrb[0].mxu0 %v371
      %v563 = vpop.f32.mrb[0].mxu0
      %v564 = vadd.f32 0.0, %v563
      %v565 = vpop.f32.mrb[0].mxu0
      %v566 = vpop.f32.mrb[0].mxu0
      %v567 = vadd.f32 0.0, %v566
      %v568 = vpop.f32.mrb[0].mxu0
      %569 = vmatprep.mubr.bf16.mxu0 %v374
      %570 = vmatmul.mubr.bf16.gmra.mrb[0].mxu0 %v373
      %v571 = vpop.f32.mrb[0].mxu0
      %v572 = vadd.f32 0.0, %v571
      %v573 = vpop.f32.mrb[0].mxu0
      %v574 = vpop.f32.mrb[0].mxu0
      %v575 = vadd.f32 0.0, %v574
      %v576 = vpop.f32.mrb[0].mxu0
      %577 = vmatprep.mubr.bf16.mxu0 %v376
      %578 = vmatmul.mubr.bf16.gmra.mrb[0].mxu0 %v375
      %v579 = vpop.f32.mrb[0].mxu0
      %v580 = vadd.f32 0.0, %v579
      %v581 = vpop.f32.mrb[0].mxu0
      %v582 = vpop.f32.mrb[0].mxu0
      %v583 = vadd.f32 0.0, %v582
      %v584 = vpop.f32.mrb[0].mxu0
      %585 = vdwg.mxu0
      %v586 = vadd.f32 %v249, %v524
      %v587 = vadd.f32 %v250, %v527
      %v588 = vadd.f32 %v251, %v532
      %v589 = vadd.f32 %v252, %v535
      %v590 = vadd.f32 %v253, %v540
      %v591 = vadd.f32 %v254, %v543
      %v592 = vadd.f32 %v255, %v548
      %v593 = vadd.f32 %v256, %v551
      %v594 = vadd.f32 %v257, %v556
      %v595 = vadd.f32 %v258, %v559
      %v596 = vadd.f32 %v259, %v564
      %v597 = vadd.f32 %v260, %v567
      %v598 = vadd.f32 %v261, %v572
      %v599 = vadd.f32 %v262, %v575
      %v600 = vadd.f32 %v263, %v580
      %v601 = vadd.f32 %v264, %v583
      %vm602 = vcmask 261120
      %603 = vst.msk [vmem:[#allocation2] sm:$0xff] %vm602, %v586
      %604 = vst.msk [vmem:[#allocation2 + $0x8] sm:$0xff] %vm602, %v587
      %605 = vst.msk [vmem:[#allocation2 + $0x10] sm:$0xff] %vm602, %v588
      %606 = vst.msk [vmem:[#allocation2 + $0x18] sm:$0xff] %vm602, %v589
      %607 = vst.msk [vmem:[#allocation2 + $0x20] sm:$0xff] %vm602, %v590
      %608 = vst.msk [vmem:[#allocation2 + $0x28] sm:$0xff] %vm602, %v591
      %609 = vst.msk [vmem:[#allocation2 + $0x30] sm:$0xff] %vm602, %v592
      %610 = vst.msk [vmem:[#allocation2 + $0x38] sm:$0xff] %vm602, %v593
      %611 = vst.msk [vmem:[#allocation2 + $0x40] sm:$0xff] %vm602, %v594
      %612 = vst.msk [vmem:[#allocation2 + $0x48] sm:$0xff] %vm602, %v595
      %613 = vst.msk [vmem:[#allocation2 + $0x50] sm:$0xff] %vm602, %v596
      %614 = vst.msk [vmem:[#allocation2 + $0x58] sm:$0xff] %vm602, %v597
      %615 = vst.msk [vmem:[#allocation2 + $0x60] sm:$0xff] %vm602, %v598
      %616 = vst.msk [vmem:[#allocation2 + $0x68] sm:$0xff] %vm602, %v599
      %617 = vst.msk [vmem:[#allocation2 + $0x70] sm:$0xff] %vm602, %v600
      %618 = vst.msk [vmem:[#allocation2 + $0x78] sm:$0xff] %vm602, %v601
      // Predicated region
      $region37: #{gcn_vaecd_forward.3} parent=31 // pred_check
        %p619 = pneg %p228
      $region38: #{gcn_vaecd_forward.3} parent=31 // pred_check_branch
        %621 = sbr.rel (%p619) target = $region40
      $region39: #{gcn_vaecd_forward.3} parent=31 // pred_region
        %v622 = vld [vmem:[#allocation2] sm:$0xff]
        %v623 = vld [vmem:[#allocation2 + $0x8] sm:$0xff]
        %v624 = vld [vmem:[#allocation2 + $0x10] sm:$0xff]
        %v625 = vld [vmem:[#allocation2 + $0x18] sm:$0xff]
        %v626 = vld [vmem:[#allocation2 + $0x20] sm:$0xff]
        %v627 = vld [vmem:[#allocation2 + $0x28] sm:$0xff]
        %v628 = vld [vmem:[#allocation2 + $0x30] sm:$0xff]
        %v629 = vld [vmem:[#allocation2 + $0x38] sm:$0xff]
        %v630 = vld [vmem:[#allocation2 + $0x40] sm:$0xff]
        %v631 = vld [vmem:[#allocation2 + $0x48] sm:$0xff]
        %v632 = vld [vmem:[#allocation2 + $0x50] sm:$0xff]
        %v633 = vld [vmem:[#allocation2 + $0x58] sm:$0xff]
        %v634 = vld [vmem:[#allocation2 + $0x60] sm:$0xff]
        %v635 = vld [vmem:[#allocation2 + $0x68] sm:$0xff]
        %v636 = vld [vmem:[#allocation2 + $0x70] sm:$0xff]
        %v637 = vld [vmem:[#allocation2 + $0x78] sm:$0xff]
        %v638 = vpack.c.bf16 %v623, %v622
        %v639 = vpack.c.bf16 %v625, %v624
        %v640 = vpack.c.bf16 %v627, %v626
        %v641 = vpack.c.bf16 %v629, %v628
        %v642 = vpack.c.bf16 %v631, %v630
        %v643 = vpack.c.bf16 %v633, %v632
        %v644 = vpack.c.bf16 %v635, %v634
        %v645 = vpack.c.bf16 %v637, %v636
        %v646 = vld [vmem:[%s2] sm:$0xf]
        %v647 = vld [vmem:[%s2 + $0x4] sm:$0xf]
        %v648 = vld [vmem:[%s2 + $0x8] sm:$0xf]
        %v649 = vld [vmem:[%s2 + $0xc] sm:$0xf]
        %v654 = vunpack.c.l.b16 %v646
        %v655 = vunpack.c.l.b16 %v647
        %v656 = vunpack.c.l.b16 %v648
        %v657 = vunpack.c.l.b16 %v649
        %v658 = vpack.c.b16 %v655, %v654
        %v659 = vpack.c.b16 %v657, %v656
        %v663 = vsel %vm602, %v638, 0
        %v666 = vsel %vm602, %v639, 0
        %v669 = vsel %vm602, %v640, 0
        %v672 = vsel %vm602, %v641, 0
        %v675 = vsel %vm602, %v642, 0
        %v678 = vsel %vm602, %v643, 0
        %v681 = vsel %vm602, %v644, 0
        %v684 = vsel %vm602, %v645, 0
        %686 = vmatprep.subr.bf16.mxu0 0
        %687 = vmatpush1.bf16.msra.mxu0 %v658
        %688 = vmatprep.subr.bf16.mxu0 0
        %689 = vmatpush1.bf16.msra.mxu0 %v659
        %690 = vmatprep.subr.bf16.mxu0 0
        %691 = vmatpush1.bf16.msra.mxu0 0
        %692 = vmatprep.subr.bf16.mxu0 0
        %693 = vmatpush1.bf16.msra.mxu0 0
        %694 = vmatprep.subr.bf16.mxu0 0
        %695 = vmatpush1.bf16.msra.mxu0 0
        %696 = vmatprep.subr.bf16.mxu0 0
        %697 = vmatpush1.bf16.msra.mxu0 0
        %698 = vmatprep.subr.bf16.mxu0 0
        %699 = vmatpush1.bf16.msra.mxu0 0
        %700 = vmatprep.subr.bf16.mxu0 0
        %701 = vmatpush1.bf16.msra.mxu0 0
        %702 = vmatprep.subr.bf16.mxu0 0
        %703 = vmatpush1.bf16.msra.mxu0 0
        %704 = vmatprep.subr.bf16.mxu0 0
        %705 = vmatpush1.bf16.msra.mxu0 0
        %706 = vmatprep.subr.bf16.mxu0 0
        %707 = vmatpush1.bf16.msra.mxu0 0
        %708 = vmatprep.subr.bf16.mxu0 0
        %709 = vmatpush1.bf16.msra.mxu0 0
        %710 = vmatprep.subr.bf16.mxu0 0
        %711 = vmatpush1.bf16.msra.mxu0 0
        %712 = vmatprep.subr.bf16.mxu0 0
        %713 = vmatpush1.bf16.msra.mxu0 0
        %714 = vmatprep.subr.bf16.mxu0 0
        %715 = vmatpush1.bf16.msra.mxu0 0
        %716 = vmatprep.subr.bf16.mxu0 0
        %717 = vmatpush1.bf16.msra.mxu0 0
        %718 = vmatprep.mubr.bf16.mxu0 0
        %719 = vmatmul.mubr.bf16.gmra.mrb[0].mxu0 %v663
        %v720 = vpop.f32.mrb[0].mxu0
        %v721 = vadd.f32 0.0, %v720
        %v722 = vpop.f32.mrb[0].mxu0
        %v723 = vpop.f32.mrb[0].mxu0
        %v724 = vadd.f32 0.0, %v723
        %v725 = vpop.f32.mrb[0].mxu0
        %726 = vmatprep.mubr.bf16.mxu0 0
        %727 = vmatmul.mubr.bf16.gmra.mrb[0].mxu0 %v666
        %v728 = vpop.f32.mrb[0].mxu0
        %v729 = vadd.f32 0.0, %v728
        %v730 = vpop.f32.mrb[0].mxu0
        %v731 = vpop.f32.mrb[0].mxu0
        %v732 = vadd.f32 0.0, %v731
        %v733 = vpop.f32.mrb[0].mxu0
        %734 = vmatprep.mubr.bf16.mxu0 0
        %735 = vmatmul.mubr.bf16.gmra.mrb[0].mxu0 %v669
        %v736 = vpop.f32.mrb[0].mxu0
        %v737 = vadd.f32 0.0, %v736
        %v738 = vpop.f32.mrb[0].mxu0
        %v739 = vpop.f32.mrb[0].mxu0
        %v740 = vadd.f32 0.0, %v739
        %v741 = vpop.f32.mrb[0].mxu0
        %742 = vmatprep.mubr.bf16.mxu0 0
        %743 = vmatmul.mubr.bf16.gmra.mrb[0].mxu0 %v672
        %v744 = vpop.f32.mrb[0].mxu0
        %v745 = vadd.f32 0.0, %v744
        %v746 = vpop.f32.mrb[0].mxu0
        %v747 = vpop.f32.mrb[0].mxu0
        %v748 = vadd.f32 0.0, %v747
        %v749 = vpop.f32.mrb[0].mxu0
        %750 = vmatprep.mubr.bf16.mxu0 0
        %751 = vmatmul.mubr.bf16.gmra.mrb[0].mxu0 %v675
        %v752 = vpop.f32.mrb[0].mxu0
        %v753 = vadd.f32 0.0, %v752
        %v754 = vpop.f32.mrb[0].mxu0
        %v755 = vpop.f32.mrb[0].mxu0
        %v756 = vadd.f32 0.0, %v755
        %v757 = vpop.f32.mrb[0].mxu0
        %758 = vmatprep.mubr.bf16.mxu0 0
        %759 = vmatmul.mubr.bf16.gmra.mrb[0].mxu0 %v678
        %v760 = vpop.f32.mrb[0].mxu0
        %v761 = vadd.f32 0.0, %v760
        %v762 = vpop.f32.mrb[0].mxu0
        %v763 = vpop.f32.mrb[0].mxu0
        %v764 = vadd.f32 0.0, %v763
        %v765 = vpop.f32.mrb[0].mxu0
        %766 = vmatprep.mubr.bf16.mxu0 0
        %767 = vmatmul.mubr.bf16.gmra.mrb[0].mxu0 %v681
        %v768 = vpop.f32.mrb[0].mxu0
        %v769 = vadd.f32 0.0, %v768
        %v770 = vpop.f32.mrb[0].mxu0
        %v771 = vpop.f32.mrb[0].mxu0
        %v772 = vadd.f32 0.0, %v771
        %v773 = vpop.f32.mrb[0].mxu0
        %774 = vmatprep.mubr.bf16.mxu0 0
        %775 = vmatmul.mubr.bf16.gmra.mrb[0].mxu0 %v684
        %v776 = vpop.f32.mrb[0].mxu0
        %v777 = vadd.f32 0.0, %v776
        %v778 = vpop.f32.mrb[0].mxu0
        %v779 = vpop.f32.mrb[0].mxu0
        %v780 = vadd.f32 0.0, %v779
        %v781 = vpop.f32.mrb[0].mxu0
        %782 = vdwg.mxu0
        %v783 = vmax.f32 %v721, 0.0
        %v784 = vmax.f32 %v724, 0.0
        %v785 = vmax.f32 %v729, 0.0
        %v786 = vmax.f32 %v732, 0.0
        %v787 = vmax.f32 %v737, 0.0
        %v788 = vmax.f32 %v740, 0.0
        %v789 = vmax.f32 %v745, 0.0
        %v790 = vmax.f32 %v748, 0.0
        %v791 = vmax.f32 %v753, 0.0
        %v792 = vmax.f32 %v756, 0.0
        %v793 = vmax.f32 %v761, 0.0
        %v794 = vmax.f32 %v764, 0.0
        %v795 = vmax.f32 %v769, 0.0
        %v796 = vmax.f32 %v772, 0.0
        %v797 = vmax.f32 %v777, 0.0
        %v798 = vmax.f32 %v780, 0.0
        %v799 = vpack.c.bf16 %v784, %v783
        %v800 = vpack.c.bf16 %v786, %v785
        %v801 = vpack.c.bf16 %v788, %v787
        %v802 = vpack.c.bf16 %v790, %v789
        %v803 = vpack.c.bf16 %v792, %v791
        %v804 = vpack.c.bf16 %v794, %v793
        %v805 = vpack.c.bf16 %v796, %v795
        %v806 = vpack.c.bf16 %v798, %v797
        %v815 = vunpack.c.l.b16 %v799
        %v816 = vunpack.c.h.b16 %v799
        %v817 = vunpack.c.l.b16 %v800
        %v818 = vunpack.c.h.b16 %v800
        %v819 = vunpack.c.l.b16 %v801
        %v820 = vunpack.c.h.b16 %v801
        %v821 = vunpack.c.l.b16 %v802
        %v822 = vunpack.c.h.b16 %v802
        %v823 = vunpack.c.l.b16 %v803
        %v824 = vunpack.c.h.b16 %v803
        %v825 = vunpack.c.l.b16 %v804
        %v826 = vunpack.c.h.b16 %v804
        %v827 = vunpack.c.l.b16 %v805
        %v828 = vunpack.c.h.b16 %v805
        %v829 = vunpack.c.l.b16 %v806
        %v830 = vunpack.c.h.b16 %v806
        %v831 = vpack.c.b16 %v815, %v815
        %v832 = vpack.c.b16 %v816, %v816
        %v833 = vpack.c.b16 %v817, %v817
        %v834 = vpack.c.b16 %v818, %v818
        %v835 = vpack.c.b16 %v819, %v819
        %v836 = vpack.c.b16 %v820, %v820
        %v837 = vpack.c.b16 %v821, %v821
        %v838 = vpack.c.b16 %v822, %v822
        %v839 = vpack.c.b16 %v823, %v823
        %v840 = vpack.c.b16 %v824, %v824
        %v841 = vpack.c.b16 %v825, %v825
        %v842 = vpack.c.b16 %v826, %v826
        %v843 = vpack.c.b16 %v827, %v827
        %v844 = vpack.c.b16 %v828, %v828
        %v845 = vpack.c.b16 %v829, %v829
        %v846 = vpack.c.b16 %v830, %v830
        %vm863 = vcmask 519168
        %864 = vst.msk [vmem:[%s225] sm:$0xf] %vm863, %v831
        %865 = vst.msk [vmem:[%s225 + $0x4] sm:$0xf] %vm863, %v832
        %866 = vst.msk [vmem:[%s225 + $0x8] sm:$0xf] %vm863, %v833
        %867 = vst.msk [vmem:[%s225 + $0xc] sm:$0xf] %vm863, %v834
        %868 = vst.msk [vmem:[%s225 + $0x10] sm:$0xf] %vm863, %v835
        %869 = vst.msk [vmem:[%s225 + $0x14] sm:$0xf] %vm863, %v836
        %870 = vst.msk [vmem:[%s225 + $0x18] sm:$0xf] %vm863, %v837
        %871 = vst.msk [vmem:[%s225 + $0x1c] sm:$0xf] %vm863, %v838
        %872 = vst.msk [vmem:[%s225 + $0x20] sm:$0xf] %vm863, %v839
        %873 = vst.msk [vmem:[%s225 + $0x24] sm:$0xf] %vm863, %v840
        %874 = vst.msk [vmem:[%s225 + $0x28] sm:$0xf] %vm863, %v841
        %875 = vst.msk [vmem:[%s225 + $0x2c] sm:$0xf] %vm863, %v842
        %876 = vst.msk [vmem:[%s225 + $0x30] sm:$0xf] %vm863, %v843
        %877 = vst.msk [vmem:[%s225 + $0x34] sm:$0xf] %vm863, %v844
        %878 = vst.msk [vmem:[%s225 + $0x38] sm:$0xf] %vm863, %v845
        %879 = vst.msk [vmem:[%s225 + $0x3c] sm:$0xf] %vm863, %v846
      $region40: #{gcn_vaecd_forward.3} parent=31 // pred_fallthru
        _
      %s880 = smul.u32 16, %s18
      %p881 = scmp.lt.s32.totalorder %s880, 31
      %s882 = scalar_select %p881, %s880, 31
      %s883 = smul.addr %s882, 4
      %s884 = scalar_lea.vmem %s3, %s883
      // Predicated region
      $region41: #{gcn_vaecd_forward.3} parent=31 // pred_check
        %p885 = pneg %p119
      $region42: #{gcn_vaecd_forward.3} parent=31 // pred_check_branch
        %887 = sbr.rel (%p885) target = $region44
      $region43: #{gcn_vaecd_forward.3} parent=31 // pred_region
        %s888 = smul.u32 16, %s18
      $region44: #{gcn_vaecd_forward.3} parent=31 // pred_fallthru
        _
    $region32: #{gcn_vaecd_forward.3} parent=5 // pred_fallthru
      _
    %p889 = scmp.le.s32.totalorder 2, %s9
    // Predicated region
    $region45: #{gcn_vaecd_forward.3} parent=5 // pred_check
      %p890 = pneg %p889
    $region46: #{gcn_vaecd_forward.3} parent=5 // pred_check_branch
      %892 = sbr.rel (%p890) target = $region48
    $region47: #{gcn_vaecd_forward.3} parent=5 // pred_region
      %s893 = ssub.s32 %s9, 2
      // Predicated region
      $region49: #{gcn_vaecd_forward.3} parent=47 // pred_check
        %p894 = pneg %p125
      $region50: #{gcn_vaecd_forward.3} parent=47 // pred_check_branch
        %896 = sbr.rel (%p894) target = $region52
      $region51: #{gcn_vaecd_forward.3} parent=47 // pred_region
        %s897 = smul.u32 16, %s20
        %p898 = scmp.lt.s32.totalorder %s897, 31
        %s899 = scalar_select %p898, %s897, 31
        %s900 = smul.addr %s899, 4
        %s901 = scalar_lea.vmem %s3, %s900
      $region52: #{gcn_vaecd_forward.3} parent=47 // pred_fallthru
        _
    $region48: #{gcn_vaecd_forward.3} parent=5 // pred_fallthru
      _
  $region6: #{gcn_vaecd_forward.3} parent=0 // loop_footer
    %s13 = sadd.s32 1, %s9
  $region7: #{gcn_vaecd_forward.3} parent=0 // loop_footer_branch
    %8 = sbr.rel target = $region3
  $region8: #{gcn_vaecd_forward.3} parent=0 // loop_exit
    _

// kernel: gcn_vaecd_forward.4
$region0: #{gcn_vaecd_forward.4}
  #allocation0 [shape = 'u32[]', space=smem, size = 0x4, offset = 0x4, fixed_abs, tag = 'smem constant byte address 0x4 - core index']
  #allocation1 [shape = 'u32[144,128]{1,0:T(1,128)}', space=vmem, size = 0x12000, scoped, tag = 'internal scratch']
  #allocation2 [shape = 'f32[128,64]{1,0:T(8,128)}', space=vmem, size = 0x10000, scoped, tag = 'scratch operand']
  %s0 = inlined_call_operand.vmem [shape: bf16[256,256], index: 0, kind: input, shape index: {}]
  %s1 = inlined_call_operand.vmem [shape: bf16[256,64], index: 1, kind: input, shape index: {}]
  %s2 = inlined_call_operand.vmem [shape: bf16[64,32], index: 2, kind: input, shape index: {}]
  %s3 = inlined_call_operand.vmem [shape: bf16[64,32], index: 3, kind: input, shape index: {}]
  %s4 = inlined_call_operand.vmem [shape: f32[256,32], index: 4, kind: output, shape index: {0}]
  %s5 = inlined_call_operand.vmem [shape: f32[256,32], index: 5, kind: output, shape index: {1}]
  %s6 = inlined_call_operand.vmem [shape: bf16[256,32], index: 6, kind: output, shape index: {2}]
  %7 = xla_tuple %s4, %s5, %s6
  %s8 = sld [smem:[#allocation0]]
  $region73: #{gcn_vaecd_forward.4} parent=0
    _
  %s10 = ssub.s32 1, %s8
  %s11 = scalar_select 0, %s10, %s8
  loop: start=0, step=1, limit=4
  $region2: #{gcn_vaecd_forward.4} parent=0 // loop_pre_header
    _
  $region3: #{gcn_vaecd_forward.4} parent=0 // loop_header
    %s13 = sphi 0, %s17
    %p14 = scmp.ge.s32.totalorder %s13, 4
    %s20 = sphi 0, %s32
    %s21 = sphi 0, %s28
    %s22 = sphi 0, %s20
    %s23 = sphi 0, %s21
    %s24 = sphi 0, %s22
    %s25 = sphi 0, %s23
    %s37 = sphi 0, %s39
    %s40 = sphi 0, %s37
    %s41 = sphi 0, %s40
    %s57 = sphi 0, %s41
    %s63 = sphi 0, %s65
    %s66 = sphi 0, %s63
    %s67 = sphi 0, %s66
    %s83 = sphi 0, %s67
    %s87 = sphi 0, %s87
    %s89 = sphi 0, %s87
    %s90 = sphi 0, %s89
    %s104 = sphi 0, %s90
    %s108 = sphi 0, %s108
    %s110 = sphi 0, %s108
    %s111 = sphi 0, %s110
    %s125 = sphi 0, %s111
    %s131 = sphi 0, %s133
    %s134 = sphi 0, %s131
    %s135 = sphi 0, %s134
    %s151 = sphi 0, %s135
    %s157 = sphi 0, %s159
    %s160 = sphi 0, %s157
    %s161 = sphi 0, %s160
    %s177 = sphi 0, %s161
    %s183 = sphi 0, %s185
    %s186 = sphi 0, %s183
    %s187 = sphi 0, %s186
    %s203 = sphi 0, %s187
  $region4: #{gcn_vaecd_forward.4} parent=0 // loop_header_branch
    %16 = sbr.rel (%p14) target = $region8
  $region5: #{gcn_vaecd_forward.4} parent=0 // loop_body
    %s18 = ssub.s32 %s13, 1
    %s19 = ssub.s32 %s13, 2
    %s26 = sadd.s32 1, %s21
    %p27 = scmp.ge.s32.totalorder %s26, 1
    %s28 = scalar_select %p27, 0, %s26
    %s29 = sadd.s32 1, %s20
    %s30 = scalar_select %p27, %s29, %s20
    %p31 = scmp.ge.s32.totalorder %s30, 2
    %s32 = scalar_select %p31, 0, %s30
    %s33 = ssub.s32 %s20, %s32
    %s34 = ssub.s32 %s21, %s28
    %s35 = sor.u32 %s33, %s34
    %p36 = scmp.eq.s32.totalorder %s35, 0
    %s38 = sadd.s32 %s37, 1
    %s39 = scalar_select %p36, %s37, %s38
    %p42 = pneg %p36
    %p43 = scmp.eq.s32.totalorder %s13, 1
    %p44 = por %p42, %p43
    %p45 = scmp.ne.s32.totalorder %s37, %s40
    %p46 = scmp.eq.s32.totalorder %s13, 0
    %p47 = por %p45, %p46
    %p48 = scmp.ne.s32.totalorder %s37, %s40
    %p49 = scmp.eq.s32.totalorder %s18, 1
    %p50 = por %p48, %p49
    %p51 = scmp.ne.s32.totalorder %s40, %s41
    %p52 = scmp.eq.s32.totalorder %s18, 0
    %p53 = por %p51, %p52
    %p54 = scmp.ne.s32.totalorder %s40, %s41
    %p55 = scmp.eq.s32.totalorder %s19, 1
    %p56 = por %p54, %p55
    %p58 = scmp.ne.s32.totalorder %s41, %s57
    %p59 = scmp.eq.s32.totalorder %s19, 0
    %p60 = por %p58, %p59
    %s61 = ssub.s32 %s21, %s28
    %p62 = scmp.eq.s32.totalorder %s61, 0
    %s64 = sadd.s32 %s63, 1
    %s65 = scalar_select %p62, %s63, %s64
    %p68 = pneg %p62
    %p69 = scmp.eq.s32.totalorder %s13, 1
    %p70 = por %p68, %p69
    %p71 = scmp.ne.s32.totalorder %s63, %s66
    %p72 = scmp.eq.s32.totalorder %s13, 0
    %p73 = por %p71, %p72
    %p74 = scmp.ne.s32.totalorder %s63, %s66
    %p75 = scmp.eq.s32.totalorder %s18, 1
    %p76 = por %p74, %p75
    %p77 = scmp.ne.s32.totalorder %s66, %s67
    %p78 = scmp.eq.s32.totalorder %s18, 0
    %p79 = por %p77, %p78
    %p80 = scmp.ne.s32.totalorder %s66, %s67
    %p81 = scmp.eq.s32.totalorder %s19, 1
    %p82 = por %p80, %p81
    %p84 = scmp.ne.s32.totalorder %s67, %s83
    %p85 = scmp.eq.s32.totalorder %s19, 0
    %p86 = por %p84, %p85
    %s88 = sadd.s32 %s87, 1
    %p91 = scmp.eq.s32.totalorder %s13, 1
    %p92 = scmp.ne.s32.totalorder %s87, %s89
    %p93 = scmp.eq.s32.totalorder %s13, 0
    %p94 = por %p92, %p93
    %p95 = scmp.ne.s32.totalorder %s87, %s89
    %p96 = scmp.eq.s32.totalorder %s18, 1
    %p97 = por %p95, %p96
    %p98 = scmp.ne.s32.totalorder %s89, %s90
    %p99 = scmp.eq.s32.totalorder %s18, 0
    %p100 = por %p98, %p99
    %p101 = scmp.ne.s32.totalorder %s89, %s90
    %p102 = scmp.eq.s32.totalorder %s19, 1
    %p103 = por %p101, %p102
    %p105 = scmp.ne.s32.totalorder %s90, %s104
    %p106 = scmp.eq.s32.totalorder %s19, 0
    %p107 = por %p105, %p106
    %s109 = sadd.s32 %s108, 1
    %p112 = scmp.eq.s32.totalorder %s13, 1
    %p113 = scmp.ne.s32.totalorder %s108, %s110
    %p114 = scmp.eq.s32.totalorder %s13, 0
    %p115 = por %p113, %p114
    %p116 = scmp.ne.s32.totalorder %s108, %s110
    %p117 = scmp.eq.s32.totalorder %s18, 1
    %p118 = por %p116, %p117
    %p119 = scmp.ne.s32.totalorder %s110, %s111
    %p120 = scmp.eq.s32.totalorder %s18, 0
    %p121 = por %p119, %p120
    %p122 = scmp.ne.s32.totalorder %s110, %s111
    %p123 = scmp.eq.s32.totalorder %s19, 1
    %p124 = por %p122, %p123
    %p126 = scmp.ne.s32.totalorder %s111, %s125
    %p127 = scmp.eq.s32.totalorder %s19, 0
    %p128 = por %p126, %p127
    %s129 = ssub.s32 %s20, %s32
    %p130 = scmp.eq.s32.totalorder %s129, 0
    %s132 = sadd.s32 %s131, 1
    %s133 = scalar_select %p130, %s131, %s132
    %p136 = pneg %p130
    %p137 = scmp.eq.s32.totalorder %s13, 1
    %p138 = por %p136, %p137
    %p139 = scmp.ne.s32.totalorder %s131, %s134
    %p140 = scmp.eq.s32.totalorder %s13, 0
    %p141 = por %p139, %p140
    %p142 = scmp.ne.s32.totalorder %s131, %s134
    %p143 = scmp.eq.s32.totalorder %s18, 1
    %p144 = por %p142, %p143
    %p145 = scmp.ne.s32.totalorder %s134, %s135
    %p146 = scmp.eq.s32.totalorder %s18, 0
    %p147 = por %p145, %p146
    %p148 = scmp.ne.s32.totalorder %s134, %s135
    %p149 = scmp.eq.s32.totalorder %s19, 1
    %p150 = por %p148, %p149
    %p152 = scmp.ne.s32.totalorder %s135, %s151
    %p153 = scmp.eq.s32.totalorder %s19, 0
    %p154 = por %p152, %p153
    %s155 = ssub.s32 %s20, %s32
    %p156 = scmp.eq.s32.totalorder %s155, 0
    %s158 = sadd.s32 %s157, 1
    %s159 = scalar_select %p156, %s157, %s158
    %p162 = pneg %p156
    %p163 = scmp.eq.s32.totalorder %s13, 1
    %p164 = por %p162, %p163
    %p165 = scmp.ne.s32.totalorder %s157, %s160
    %p166 = scmp.eq.s32.totalorder %s13, 0
    %p167 = por %p165, %p166
    %p168 = scmp.ne.s32.totalorder %s157, %s160
    %p169 = scmp.eq.s32.totalorder %s18, 1
    %p170 = por %p168, %p169
    %p171 = scmp.ne.s32.totalorder %s160, %s161
    %p172 = scmp.eq.s32.totalorder %s18, 0
    %p173 = por %p171, %p172
    %p174 = scmp.ne.s32.totalorder %s160, %s161
    %p175 = scmp.eq.s32.totalorder %s19, 1
    %p176 = por %p174, %p175
    %p178 = scmp.ne.s32.totalorder %s161, %s177
    %p179 = scmp.eq.s32.totalorder %s19, 0
    %p180 = por %p178, %p179
    %s181 = ssub.s32 %s20, %s32
    %p182 = scmp.eq.s32.totalorder %s181, 0
    %s184 = sadd.s32 %s183, 1
    %s185 = scalar_select %p182, %s183, %s184
    %p188 = pneg %p182
    %p189 = scmp.eq.s32.totalorder %s13, 1
    %p190 = por %p188, %p189
    %p191 = scmp.ne.s32.totalorder %s183, %s186
    %p192 = scmp.eq.s32.totalorder %s13, 0
    %p193 = por %p191, %p192
    %p194 = scmp.ne.s32.totalorder %s183, %s186
    %p195 = scmp.eq.s32.totalorder %s18, 1
    %p196 = por %p194, %p195
    %p197 = scmp.ne.s32.totalorder %s186, %s187
    %p198 = scmp.eq.s32.totalorder %s18, 0
    %p199 = por %p197, %p198
    %p200 = scmp.ne.s32.totalorder %s186, %s187
    %p201 = scmp.eq.s32.totalorder %s19, 1
    %p202 = por %p200, %p201
    %p204 = scmp.ne.s32.totalorder %s187, %s203
    %p205 = scmp.eq.s32.totalorder %s19, 0
    %p206 = por %p204, %p205
    %p207 = scmp.le.s32.totalorder 1, %s13
    %p208 = scmp.lt.s32.totalorder %s13, 3
    %p209 = pnand %p207, %p208
    %p210 = pneg %p209
    // Predicated region
    $region9: #{gcn_vaecd_forward.4} parent=5 // pred_check
      _
    $region10: #{gcn_vaecd_forward.4} parent=5 // pred_check_branch
      %212 = sbr.rel (%p209) target = $region12
    $region11: #{gcn_vaecd_forward.4} parent=5 // pred_region
      %s213 = ssub.s32 %s13, 1
      // Predicated region
      $region13: #{gcn_vaecd_forward.4} parent=11 // pred_check
        %p214 = pneg %p79
      $region14: #{gcn_vaecd_forward.4} parent=11 // pred_check_branch
        %216 = sbr.rel (%p214) target = $region16
      $region15: #{gcn_vaecd_forward.4} parent=11 // pred_region
        %s217 = smul.u32 32, %s23
        %p218 = scmp.lt.s32.totalorder %s217, 31
        %s219 = scalar_select %p218, %s217, 31
        %s220 = smul.addr %s219, 4
        %s221 = scalar_lea.vmem %s1, %s220
        %s222 = smul.u32 32, %s23
      $region16: #{gcn_vaecd_forward.4} parent=11 // pred_fallthru
        _
      // Predicated region
      $region17: #{gcn_vaecd_forward.4} parent=11 // pred_check
        %p223 = pneg %p100
      $region18: #{gcn_vaecd_forward.4} parent=11 // pred_check_branch
        %225 = sbr.rel (%p223) target = $region20
      $region19: #{gcn_vaecd_forward.4} parent=11 // pred_region
        _
      $region20: #{gcn_vaecd_forward.4} parent=11 // pred_fallthru
        _
      // Predicated region
      $region21: #{gcn_vaecd_forward.4} parent=11 // pred_check
        %p226 = pneg %p121
      $region22: #{gcn_vaecd_forward.4} parent=11 // pred_check_branch
        %228 = sbr.rel (%p226) target = $region24
      $region23: #{gcn_vaecd_forward.4} parent=11 // pred_region
        _
      $region24: #{gcn_vaecd_forward.4} parent=11 // pred_fallthru
        _
    $region12: #{gcn_vaecd_forward.4} parent=5 // pred_fallthru
      _
    %p229 = scmp.lt.s32.totalorder %s13, 2
    // Predicated region
    $region25: #{gcn_vaecd_forward.4} parent=5 // pred_check
      %p230 = pneg %p229
    $region26: #{gcn_vaecd_forward.4} parent=5 // pred_check_branch
      %232 = sbr.rel (%p230) target = $region28
    $region27: #{gcn_vaecd_forward.4} parent=5 // pred_region
      // Predicated region
      $region29: #{gcn_vaecd_forward.4} parent=27 // pred_check
        %p233 = pneg %p47
      $region30: #{gcn_vaecd_forward.4} parent=27 // pred_check_branch
        %235 = sbr.rel (%p233) target = $region32
      $region31: #{gcn_vaecd_forward.4} parent=27 // pred_region
        %s236 = smul.u32 16, %s20
        %s237 = smul.u32 2, %s21
        %p238 = scmp.lt.s32.totalorder %s236, 31
        %s239 = scalar_select %p238, %s236, 31
        %p240 = scmp.lt.s32.totalorder %s237, 1
        %s241 = scalar_select %p240, %s237, 1
        %s242 = smul.addr %s239, 2
        %s243 = sadd.s32 %s241, %s242
        %s244 = smul.addr %s243, 4
        %s245 = scalar_lea.vmem %s0, %s244
        %s246 = smul.u32 16, %s20
        %s247 = smul.u32 2, %s21
      $region32: #{gcn_vaecd_forward.4} parent=27 // pred_fallthru
        _
    $region28: #{gcn_vaecd_forward.4} parent=5 // pred_fallthru
      _
    %p248 = scmp.le.s32.totalorder 1, %s13
    %p249 = scmp.lt.s32.totalorder %s13, 3
    %p250 = pnand %p248, %p249
    %p251 = pneg %p250
    // Predicated region
    $region33: #{gcn_vaecd_forward.4} parent=5 // pred_check
      _
    $region34: #{gcn_vaecd_forward.4} parent=5 // pred_check_branch
      %253 = sbr.rel (%p250) target = $region36
    $region35: #{gcn_vaecd_forward.4} parent=5 // pred_region
      %s254 = ssub.s32 %s13, 1
      %s255 = smul.u32 16, %s22
      %s256 = smul.u32 2, %s23
      %p257 = scmp.lt.s32.totalorder %s255, 31
      %s258 = scalar_select %p257, %s255, 31
      %p259 = scmp.lt.s32.totalorder %s256, 1
      %s260 = scalar_select %p259, %s256, 1
      %s261 = smul.addr %s258, 2
      %s262 = sadd.s32 %s260, %s261
      %s263 = smul.addr %s262, 4
      %s264 = scalar_lea.vmem %s0, %s263
      %p265 = pneg %p53
      %p266 = pneg %p50
      %s267 = smul.u32 32, %s23
      %p268 = scmp.lt.s32.totalorder %s267, 31
      %s269 = scalar_select %p268, %s267, 31
      %s270 = smul.addr %s269, 4
      %s271 = scalar_lea.vmem %s1, %s270
      %p272 = pneg %p79
      %p273 = pneg %p76
      %p274 = pneg %p100
      %p275 = pneg %p97
      %p276 = pneg %p121
      %p277 = pneg %p118
      %p278 = pneg %p147
      %p279 = pneg %p144
      %s280 = smul.u32 16, %s22
      %p281 = scmp.lt.s32.totalorder %s280, 31
      %s282 = scalar_select %p281, %s280, 31
      %s283 = smul.addr %s282, 8
      %s284 = scalar_lea.vmem %s4, %s283
      %p285 = pneg %p173
      %p286 = pneg %p170
      %s287 = smul.u32 16, %s22
      %p288 = scmp.lt.s32.totalorder %s287, 31
      %s289 = scalar_select %p288, %s287, 31
      %s290 = smul.addr %s289, 8
      %s291 = scalar_lea.vmem %s5, %s290
      %p292 = pneg %p199
      %p293 = pneg %p196
      %s294 = smul.u32 16, %s22
      %p295 = scmp.lt.s32.totalorder %s294, 31
      %s296 = scalar_select %p295, %s294, 31
      %s297 = smul.addr %s296, 4
      %s298 = scalar_lea.vmem %s6, %s297
      %s299 = smul.u32 16, %s22
      %s300 = smul.u32 2, %s23
      %p301 = scmp.lt.s32.totalorder %s299, 31
      %s302 = scalar_select %p301, %s299, 31
      %p303 = scmp.lt.s32.totalorder %s300, 1
      %s304 = scalar_select %p303, %s300, 1
      %s305 = smul.addr %s302, 2
      %s306 = sadd.s32 %s304, %s305
      %s307 = smul.addr %s306, 4
      %s308 = scalar_lea.vmem %s0, %s307
      %s309 = smul.u32 16, %s22
      %s310 = smul.u32 2, %s23
      %s311 = smul.u32 32, %s23
      %p312 = scmp.lt.s32.totalorder %s311, 31
      %s313 = scalar_select %p312, %s311, 31
      %s314 = smul.addr %s313, 4
      %s315 = scalar_lea.vmem %s1, %s314
      %s316 = smul.u32 32, %s23
      %s317 = smul.u32 16, %s22
      %p318 = scmp.lt.s32.totalorder %s317, 31
      %s319 = scalar_select %p318, %s317, 31
      %s320 = smul.addr %s319, 8
      %s321 = scalar_lea.vmem %s4, %s320
      %s322 = smul.u32 16, %s22
      %s323 = smul.u32 16, %s22
      %p324 = scmp.lt.s32.totalorder %s323, 31
      %s325 = scalar_select %p324, %s323, 31
      %s326 = smul.addr %s325, 8
      %s327 = scalar_lea.vmem %s5, %s326
      %s328 = smul.u32 16, %s22
      %s329 = smul.u32 16, %s22
      %p330 = scmp.lt.s32.totalorder %s329, 31
      %s331 = scalar_select %p330, %s329, 31
      %s332 = smul.addr %s331, 4
      %s333 = scalar_lea.vmem %s6, %s332
      %s334 = smul.u32 16, %s22
      %p336 = scmp.eq.s32.totalorder %s23, 0
      // Predicated region
      $region37: #{gcn_vaecd_forward.4} parent=35 // pred_check
        %p337 = pneg %p336
      $region38: #{gcn_vaecd_forward.4} parent=35 // pred_check_branch
        %339 = sbr.rel (%p337) target = $region40
      $region39: #{gcn_vaecd_forward.4} parent=35 // pred_region
        %vm340 = vcmask 523264
        %341 = vst.msk [vmem:[#allocation2] sm:$0xff] %vm340, 0.0
        %342 = vst.msk [vmem:[#allocation2 + $0x8] sm:$0xff] %vm340, 0.0
        %343 = vst.msk [vmem:[#allocation2 + $0x10] sm:$0xff] %vm340, 0.0
        %344 = vst.msk [vmem:[#allocation2 + $0x18] sm:$0xff] %vm340, 0.0
        %345 = vst.msk [vmem:[#allocation2 + $0x20] sm:$0xff] %vm340, 0.0
        %346 = vst.msk [vmem:[#allocation2 + $0x28] sm:$0xff] %vm340, 0.0
        %347 = vst.msk [vmem:[#allocation2 + $0x30] sm:$0xff] %vm340, 0.0
        %348 = vst.msk [vmem:[#allocation2 + $0x38] sm:$0xff] %vm340, 0.0
        %349 = vst.msk [vmem:[#allocation2 + $0x40] sm:$0xff] %vm340, 0.0
        %350 = vst.msk [vmem:[#allocation2 + $0x48] sm:$0xff] %vm340, 0.0
        %351 = vst.msk [vmem:[#allocation2 + $0x50] sm:$0xff] %vm340, 0.0
        %352 = vst.msk [vmem:[#allocation2 + $0x58] sm:$0xff] %vm340, 0.0
        %353 = vst.msk [vmem:[#allocation2 + $0x60] sm:$0xff] %vm340, 0.0
        %354 = vst.msk [vmem:[#allocation2 + $0x68] sm:$0xff] %vm340, 0.0
        %355 = vst.msk [vmem:[#allocation2 + $0x70] sm:$0xff] %vm340, 0.0
        %356 = vst.msk [vmem:[#allocation2 + $0x78] sm:$0xff] %vm340, 0.0
      $region40: #{gcn_vaecd_forward.4} parent=35 // pred_fallthru
        _
      %v357 = vld [vmem:[#allocation2] sm:$0xff]
      %v358 = vld [vmem:[#allocation2 + $0x8] sm:$0xff]
      %v359 = vld [vmem:[#allocation2 + $0x10] sm:$0xff]
      %v360 = vld [vmem:[#allocation2 + $0x18] sm:$0xff]
      %v361 = vld [vmem:[#allocation2 + $0x20] sm:$0xff]
      %v362 = vld [vmem:[#allocation2 + $0x28] sm:$0xff]
      %v363 = vld [vmem:[#allocation2 + $0x30] sm:$0xff]
      %v364 = vld [vmem:[#allocation2 + $0x38] sm:$0xff]
      %v365 = vld [vmem:[#allocation2 + $0x40] sm:$0xff]
      %v366 = vld [vmem:[#allocation2 + $0x48] sm:$0xff]
      %v367 = vld [vmem:[#allocation2 + $0x50] sm:$0xff]
      %v368 = vld [vmem:[#allocation2 + $0x58] sm:$0xff]
      %v369 = vld [vmem:[#allocation2 + $0x60] sm:$0xff]
      %v370 = vld [vmem:[#allocation2 + $0x68] sm:$0xff]
      %v371 = vld [vmem:[#allocation2 + $0x70] sm:$0xff]
      %v372 = vld [vmem:[#allocation2 + $0x78] sm:$0xff]
      %v373 = vld [vmem:[%s308] sm:$0xff]
      %v374 = vld [vmem:[%s308 + $0x8] sm:$0xff]
      %v375 = vld [vmem:[%s308 + $0x10] sm:$0xff]
      %v376 = vld [vmem:[%s308 + $0x18] sm:$0xff]
      %v377 = vld [vmem:[%s308 + $0x20] sm:$0xff]
      %v378 = vld [vmem:[%s308 + $0x28] sm:$0xff]
      %v379 = vld [vmem:[%s308 + $0x30] sm:$0xff]
      %v380 = vld [vmem:[%s308 + $0x38] sm:$0xff]
      %v381 = vld [vmem:[%s308 + $0x40] sm:$0xff]
      %v382 = vld [vmem:[%s308 + $0x48] sm:$0xff]
      %v383 = vld [vmem:[%s308 + $0x50] sm:$0xff]
      %v384 = vld [vmem:[%s308 + $0x58] sm:$0xff]
      %v385 = vld [vmem:[%s308 + $0x60] sm:$0xff]
      %v386 = vld [vmem:[%s308 + $0x68] sm:$0xff]
      %v387 = vld [vmem:[%s308 + $0x70] sm:$0xff]
      %v388 = vld [vmem:[%s308 + $0x78] sm:$0xff]
      %v389 = vld [vmem:[%s315] sm:$0xf]
      %v390 = vld [vmem:[%s315 + $0x4] sm:$0xf]
      %v391 = vld [vmem:[%s315 + $0x8] sm:$0xf]
      %v392 = vld [vmem:[%s315 + $0xc] sm:$0xf]
      %v393 = vld [vmem:[%s315 + $0x10] sm:$0xf]
      %v394 = vld [vmem:[%s315 + $0x14] sm:$0xf]
      %v395 = vld [vmem:[%s315 + $0x18] sm:$0xf]
      %v396 = vld [vmem:[%s315 + $0x1c] sm:$0xf]
      %v397 = vld [vmem:[%s315 + $0x20] sm:$0xf]
      %v398 = vld [vmem:[%s315 + $0x24] sm:$0xf]
      %v399 = vld [vmem:[%s315 + $0x28] sm:$0xf]
      %v400 = vld [vmem:[%s315 + $0x2c] sm:$0xf]
      %v401 = vld [vmem:[%s315 + $0x30] sm:$0xf]
      %v402 = vld [vmem:[%s315 + $0x34] sm:$0xf]
      %v403 = vld [vmem:[%s315 + $0x38] sm:$0xf]
      %v404 = vld [vmem:[%s315 + $0x3c] sm:$0xf]
      %v405 = vld [vmem:[%s315 + $0x40] sm:$0xf]
      %v406 = vld [vmem:[%s315 + $0x44] sm:$0xf]
      %v407 = vld [vmem:[%s315 + $0x48] sm:$0xf]
      %v408 = vld [vmem:[%s315 + $0x4c] sm:$0xf]
      %v409 = vld [vmem:[%s315 + $0x50] sm:$0xf]
      %v410 = vld [vmem:[%s315 + $0x54] sm:$0xf]
      %v411 = vld [vmem:[%s315 + $0x58] sm:$0xf]
      %v412 = vld [vmem:[%s315 + $0x5c] sm:$0xf]
      %v413 = vld [vmem:[%s315 + $0x60] sm:$0xf]
      %v414 = vld [vmem:[%s315 + $0x64] sm:$0xf]
      %v415 = vld [vmem:[%s315 + $0x68] sm:$0xf]
      %v416 = vld [vmem:[%s315 + $0x6c] sm:$0xf]
      %v417 = vld [vmem:[%s315 + $0x70] sm:$0xf]
      %v418 = vld [vmem:[%s315 + $0x74] sm:$0xf]
      %v419 = vld [vmem:[%s315 + $0x78] sm:$0xf]
      %v420 = vld [vmem:[%s315 + $0x7c] sm:$0xf]
      %v437 = vunpack.c.l.b16 %v373
      %v438 = vunpack.c.h.b16 %v373
      %v439 = vunpack.c.l.b16 %v374
      %v440 = vunpack.c.h.b16 %v374
      %v441 = vunpack.c.l.b16 %v375
      %v442 = vunpack.c.h.b16 %v375
      %v443 = vunpack.c.l.b16 %v376
      %v444 = vunpack.c.h.b16 %v376
      %v445 = vunpack.c.l.b16 %v377
      %v446 = vunpack.c.h.b16 %v377
      %v447 = vunpack.c.l.b16 %v378
      %v448 = vunpack.c.h.b16 %v378
      %v449 = vunpack.c.l.b16 %v379
      %v450 = vunpack.c.h.b16 %v379
      %v451 = vunpack.c.l.b16 %v380
      %v452 = vunpack.c.h.b16 %v380
      %v453 = vunpack.c.l.b16 %v381
      %v454 = vunpack.c.h.b16 %v381
      %v455 = vunpack.c.l.b16 %v382
      %v456 = vunpack.c.h.b16 %v382
      %v457 = vunpack.c.l.b16 %v383
      %v458 = vunpack.c.h.b16 %v383
      %v459 = vunpack.c.l.b16 %v384
      %v460 = vunpack.c.h.b16 %v384
      %v461 = vunpack.c.l.b16 %v385
      %v462 = vunpack.c.h.b16 %v385
      %v463 = vunpack.c.l.b16 %v386
      %v464 = vunpack.c.h.b16 %v386
      %v465 = vunpack.c.l.b16 %v387
      %v466 = vunpack.c.h.b16 %v387
      %v467 = vunpack.c.l.b16 %v388
      %v468 = vunpack.c.h.b16 %v388
      %v469 = vpack.c.b16 %v439, %v437
      %v470 = vpack.c.b16 %v440, %v438
      %v471 = vpack.c.b16 %v443, %v441
      %v472 = vpack.c.b16 %v444, %v442
      %v473 = vpack.c.b16 %v447, %v445
      %v474 = vpack.c.b16 %v448, %v446
      %v475 = vpack.c.b16 %v451, %v449
      %v476 = vpack.c.b16 %v452, %v450
      %v477 = vpack.c.b16 %v455, %v453
      %v478 = vpack.c.b16 %v456, %v454
      %v479 = vpack.c.b16 %v459, %v457
      %v480 = vpack.c.b16 %v460, %v458
      %v481 = vpack.c.b16 %v463, %v461
      %v482 = vpack.c.b16 %v464, %v462
      %v483 = vpack.c.b16 %v467, %v465
      %v484 = vpack.c.b16 %v468, %v466
      %v533 = vunpack.c.l.b16 %v389
      %v534 = vunpack.c.l.b16 %v390
      %v535 = vunpack.c.l.b16 %v391
      %v536 = vunpack.c.l.b16 %v392
      %v537 = vunpack.c.l.b16 %v393
      %v538 = vunpack.c.l.b16 %v394
      %v539 = vunpack.c.l.b16 %v395
      %v540 = vunpack.c.l.b16 %v396
      %v541 = vunpack.c.l.b16 %v397
      %v542 = vunpack.c.l.b16 %v398
      %v543 = vunpack.c.l.b16 %v399
      %v544 = vunpack.c.l.b16 %v400
      %v545 = vunpack.c.l.b16 %v401
      %v546 = vunpack.c.l.b16 %v402
      %v547 = vunpack.c.l.b16 %v403
      %v548 = vunpack.c.l.b16 %v404
      %v549 = vunpack.c.l.b16 %v405
      %v550 = vunpack.c.l.b16 %v406
      %v551 = vunpack.c.l.b16 %v407
      %v552 = vunpack.c.l.b16 %v408
      %v553 = vunpack.c.l.b16 %v409
      %v554 = vunpack.c.l.b16 %v410
      %v555 = vunpack.c.l.b16 %v411
      %v556 = vunpack.c.l.b16 %v412
      %v557 = vunpack.c.l.b16 %v413
      %v558 = vunpack.c.l.b16 %v414
      %v559 = vunpack.c.l.b16 %v415
      %v560 = vunpack.c.l.b16 %v416
      %v561 = vunpack.c.l.b16 %v417
      %v562 = vunpack.c.l.b16 %v418
      %v563 = vunpack.c.l.b16 %v419
      %v564 = vunpack.c.l.b16 %v420
      %v565 = vpack.c.b16 %v534, %v533
      %v566 = vpack.c.b16 %v536, %v535
      %v567 = vpack.c.b16 %v538, %v537
      %v568 = vpack.c.b16 %v540, %v539
      %v569 = vpack.c.b16 %v542, %v541
      %v570 = vpack.c.b16 %v544, %v543
      %v571 = vpack.c.b16 %v546, %v545
      %v572 = vpack.c.b16 %v548, %v547
      %v573 = vpack.c.b16 %v550, %v549
      %v574 = vpack.c.b16 %v552, %v551
      %v575 = vpack.c.b16 %v554, %v553
      %v576 = vpack.c.b16 %v556, %v555
      %v577 = vpack.c.b16 %v558, %v557
      %v578 = vpack.c.b16 %v560, %v559
      %v579 = vpack.c.b16 %v562, %v561
      %v580 = vpack.c.b16 %v564, %v563
      %597 = vmatprep.subr.bf16.mxu0 0
      %598 = vmatpush1.bf16.msra.mxu0 %v565
      %599 = vmatprep.subr.bf16.mxu0 0
      %600 = vmatpush1.bf16.msra.mxu0 %v566
      %601 = vmatprep.subr.bf16.mxu0 0
      %602 = vmatpush1.bf16.msra.mxu0 %v567
      %603 = vmatprep.subr.bf16.mxu0 0
      %604 = vmatpush1.bf16.msra.mxu0 %v568
      %605 = vmatprep.subr.bf16.mxu0 0
      %606 = vmatpush1.bf16.msra.mxu0 %v569
      %607 = vmatprep.subr.bf16.mxu0 0
      %608 = vmatpush1.bf16.msra.mxu0 %v570
      %609 = vmatprep.subr.bf16.mxu0 0
      %610 = vmatpush1.bf16.msra.mxu0 %v571
      %611 = vmatprep.subr.bf16.mxu0 0
      %612 = vmatpush1.bf16.msra.mxu0 %v572
      %613 = vmatprep.subr.bf16.mxu0 0
      %614 = vmatpush1.bf16.msra.mxu0 %v573
      %615 = vmatprep.subr.bf16.mxu0 0
      %616 = vmatpush1.bf16.msra.mxu0 %v574
      %617 = vmatprep.subr.bf16.mxu0 0
      %618 = vmatpush1.bf16.msra.mxu0 %v575
      %619 = vmatprep.subr.bf16.mxu0 0
      %620 = vmatpush1.bf16.msra.mxu0 %v576
      %621 = vmatprep.subr.bf16.mxu0 0
      %622 = vmatpush1.bf16.msra.mxu0 %v577
      %623 = vmatprep.subr.bf16.mxu0 0
      %624 = vmatpush1.bf16.msra.mxu0 %v578
      %625 = vmatprep.subr.bf16.mxu0 0
      %626 = vmatpush1.bf16.msra.mxu0 %v579
      %627 = vmatprep.subr.bf16.mxu0 0
      %628 = vmatpush1.bf16.msra.mxu0 %v580
      %629 = vmatprep.mubr.bf16.mxu0 %v470
      %630 = vmatmul.mubr.bf16.gmra.mrb[0].mxu0 %v469
      %v631 = vpop.f32.mrb[0].mxu0
      %v632 = vadd.f32 0.0, %v631
      %v633 = vpop.f32.mrb[0].mxu0
      %v634 = vpop.f32.mrb[0].mxu0
      %v635 = vadd.f32 0.0, %v634
      %v636 = vpop.f32.mrb[0].mxu0
      %637 = vmatprep.mubr.bf16.mxu0 %v472
      %638 = vmatmul.mubr.bf16.gmra.mrb[0].mxu0 %v471
      %v639 = vpop.f32.mrb[0].mxu0
      %v640 = vadd.f32 0.0, %v639
      %v641 = vpop.f32.mrb[0].mxu0
      %v642 = vpop.f32.mrb[0].mxu0
      %v643 = vadd.f32 0.0, %v642
      %v644 = vpop.f32.mrb[0].mxu0
      %645 = vmatprep.mubr.bf16.mxu0 %v474
      %646 = vmatmul.mubr.bf16.gmra.mrb[0].mxu0 %v473
      %v647 = vpop.f32.mrb[0].mxu0
      %v648 = vadd.f32 0.0, %v647
      %v649 = vpop.f32.mrb[0].mxu0
      %v650 = vpop.f32.mrb[0].mxu0
      %v651 = vadd.f32 0.0, %v650
      %v652 = vpop.f32.mrb[0].mxu0
      %653 = vmatprep.mubr.bf16.mxu0 %v476
      %654 = vmatmul.mubr.bf16.gmra.mrb[0].mxu0 %v475
      %v655 = vpop.f32.mrb[0].mxu0
      %v656 = vadd.f32 0.0, %v655
      %v657 = vpop.f32.mrb[0].mxu0
      %v658 = vpop.f32.mrb[0].mxu0
      %v659 = vadd.f32 0.0, %v658
      %v660 = vpop.f32.mrb[0].mxu0
      %661 = vmatprep.mubr.bf16.mxu0 %v478
      %662 = vmatmul.mubr.bf16.gmra.mrb[0].mxu0 %v477
      %v663 = vpop.f32.mrb[0].mxu0
      %v664 = vadd.f32 0.0, %v663
      %v665 = vpop.f32.mrb[0].mxu0
      %v666 = vpop.f32.mrb[0].mxu0
      %v667 = vadd.f32 0.0, %v666
      %v668 = vpop.f32.mrb[0].mxu0
      %669 = vmatprep.mubr.bf16.mxu0 %v480
      %670 = vmatmul.mubr.bf16.gmra.mrb[0].mxu0 %v479
      %v671 = vpop.f32.mrb[0].mxu0
      %v672 = vadd.f32 0.0, %v671
      %v673 = vpop.f32.mrb[0].mxu0
      %v674 = vpop.f32.mrb[0].mxu0
      %v675 = vadd.f32 0.0, %v674
      %v676 = vpop.f32.mrb[0].mxu0
      %677 = vmatprep.mubr.bf16.mxu0 %v482
      %678 = vmatmul.mubr.bf16.gmra.mrb[0].mxu0 %v481
      %v679 = vpop.f32.mrb[0].mxu0
      %v680 = vadd.f32 0.0, %v679
      %v681 = vpop.f32.mrb[0].mxu0
      %v682 = vpop.f32.mrb[0].mxu0
      %v683 = vadd.f32 0.0, %v682
      %v684 = vpop.f32.mrb[0].mxu0
      %685 = vmatprep.mubr.bf16.mxu0 %v484
      %686 = vmatmul.mubr.bf16.gmra.mrb[0].mxu0 %v483
      %v687 = vpop.f32.mrb[0].mxu0
      %v688 = vadd.f32 0.0, %v687
      %v689 = vpop.f32.mrb[0].mxu0
      %v690 = vpop.f32.mrb[0].mxu0
      %v691 = vadd.f32 0.0, %v690
      %v692 = vpop.f32.mrb[0].mxu0
      %693 = vdwg.mxu0
      %v694 = vadd.f32 %v357, %v632
      %v695 = vadd.f32 %v358, %v635
      %v696 = vadd.f32 %v359, %v640
      %v697 = vadd.f32 %v360, %v643
      %v698 = vadd.f32 %v361, %v648
      %v699 = vadd.f32 %v362, %v651
      %v700 = vadd.f32 %v363, %v656
      %v701 = vadd.f32 %v364, %v659
      %v702 = vadd.f32 %v365, %v664
      %v703 = vadd.f32 %v366, %v667
      %v704 = vadd.f32 %v367, %v672
      %v705 = vadd.f32 %v368, %v675
      %v706 = vadd.f32 %v369, %v680
      %v707 = vadd.f32 %v370, %v683
      %v708 = vadd.f32 %v371, %v688
      %v709 = vadd.f32 %v372, %v691
      %vm710 = vcmask 523264
      %711 = vst.msk [vmem:[#allocation2] sm:$0xff] %vm710, %v694
      %712 = vst.msk [vmem:[#allocation2 + $0x8] sm:$0xff] %vm710, %v695
      %713 = vst.msk [vmem:[#allocation2 + $0x10] sm:$0xff] %vm710, %v696
      %714 = vst.msk [vmem:[#allocation2 + $0x18] sm:$0xff] %vm710, %v697
      %715 = vst.msk [vmem:[#allocation2 + $0x20] sm:$0xff] %vm710, %v698
      %716 = vst.msk [vmem:[#allocation2 + $0x28] sm:$0xff] %vm710, %v699
      %717 = vst.msk [vmem:[#allocation2 + $0x30] sm:$0xff] %vm710, %v700
      %718 = vst.msk [vmem:[#allocation2 + $0x38] sm:$0xff] %vm710, %v701
      %719 = vst.msk [vmem:[#allocation2 + $0x40] sm:$0xff] %vm710, %v702
      %720 = vst.msk [vmem:[#allocation2 + $0x48] sm:$0xff] %vm710, %v703
      %721 = vst.msk [vmem:[#allocation2 + $0x50] sm:$0xff] %vm710, %v704
      %722 = vst.msk [vmem:[#allocation2 + $0x58] sm:$0xff] %vm710, %v705
      %723 = vst.msk [vmem:[#allocation2 + $0x60] sm:$0xff] %vm710, %v706
      %724 = vst.msk [vmem:[#allocation2 + $0x68] sm:$0xff] %vm710, %v707
      %725 = vst.msk [vmem:[#allocation2 + $0x70] sm:$0xff] %vm710, %v708
      %726 = vst.msk [vmem:[#allocation2 + $0x78] sm:$0xff] %vm710, %v709
      // Predicated region
      $region41: #{gcn_vaecd_forward.4} parent=35 // pred_check
        %p727 = pneg %p336
      $region42: #{gcn_vaecd_forward.4} parent=35 // pred_check_branch
        %729 = sbr.rel (%p727) target = $region44
      $region43: #{gcn_vaecd_forward.4} parent=35 // pred_region
        %v730 = vld [vmem:[#allocation2] sm:$0xff]
        %v731 = vld [vmem:[#allocation2 + $0x8] sm:$0xff]
        %v732 = vld [vmem:[#allocation2 + $0x10] sm:$0xff]
        %v733 = vld [vmem:[#allocation2 + $0x18] sm:$0xff]
        %v734 = vld [vmem:[#allocation2 + $0x20] sm:$0xff]
        %v735 = vld [vmem:[#allocation2 + $0x28] sm:$0xff]
        %v736 = vld [vmem:[#allocation2 + $0x30] sm:$0xff]
        %v737 = vld [vmem:[#allocation2 + $0x38] sm:$0xff]
        %v738 = vld [vmem:[#allocation2 + $0x40] sm:$0xff]
        %v739 = vld [vmem:[#allocation2 + $0x48] sm:$0xff]
        %v740 = vld [vmem:[#allocation2 + $0x50] sm:$0xff]
        %v741 = vld [vmem:[#allocation2 + $0x58] sm:$0xff]
        %v742 = vld [vmem:[#allocation2 + $0x60] sm:$0xff]
        %v743 = vld [vmem:[#allocation2 + $0x68] sm:$0xff]
        %v744 = vld [vmem:[#allocation2 + $0x70] sm:$0xff]
        %v745 = vld [vmem:[#allocation2 + $0x78] sm:$0xff]
        %v746 = vpack.c.bf16 %v731, %v730
        %v747 = vpack.c.bf16 %v733, %v732
        %v748 = vpack.c.bf16 %v735, %v734
        %v749 = vpack.c.bf16 %v737, %v736
        %v750 = vpack.c.bf16 %v739, %v738
        %v751 = vpack.c.bf16 %v741, %v740
        %v752 = vpack.c.bf16 %v743, %v742
        %v753 = vpack.c.bf16 %v745, %v744
        %v754 = vld [vmem:[%s2] sm:$0xf]
        %v755 = vld [vmem:[%s2 + $0x4] sm:$0xf]
        %v756 = vld [vmem:[%s2 + $0x8] sm:$0xf]
        %v757 = vld [vmem:[%s2 + $0xc] sm:$0xf]
        %v758 = vld [vmem:[%s2 + $0x10] sm:$0xf]
        %v759 = vld [vmem:[%s2 + $0x14] sm:$0xf]
        %v760 = vld [vmem:[%s2 + $0x18] sm:$0xf]
        %v761 = vld [vmem:[%s2 + $0x1c] sm:$0xf]
        %v770 = vunpack.c.l.b16 %v754
        %v771 = vunpack.c.l.b16 %v755
        %v772 = vunpack.c.l.b16 %v756
        %v773 = vunpack.c.l.b16 %v757
        %v774 = vunpack.c.l.b16 %v758
        %v775 = vunpack.c.l.b16 %v759
        %v776 = vunpack.c.l.b16 %v760
        %v777 = vunpack.c.l.b16 %v761
        %v778 = vpack.c.b16 %v771, %v770
        %v779 = vpack.c.b16 %v773, %v772
        %v780 = vpack.c.b16 %v775, %v774
        %v781 = vpack.c.b16 %v777, %v776
        %v787 = vsel %vm710, %v746, 0
        %v790 = vsel %vm710, %v747, 0
        %v793 = vsel %vm710, %v748, 0
        %v796 = vsel %vm710, %v749, 0
        %v799 = vsel %vm710, %v750, 0
        %v802 = vsel %vm710, %v751, 0
        %v805 = vsel %vm710, %v752, 0
        %v808 = vsel %vm710, %v753, 0
        %810 = vmatprep.subr.bf16.mxu0 0
        %811 = vmatpush1.bf16.msra.mxu0 %v778
        %812 = vmatprep.subr.bf16.mxu0 0
        %813 = vmatpush1.bf16.msra.mxu0 %v779
        %814 = vmatprep.subr.bf16.mxu0 0
        %815 = vmatpush1.bf16.msra.mxu0 %v780
        %816 = vmatprep.subr.bf16.mxu0 0
        %817 = vmatpush1.bf16.msra.mxu0 %v781
        %818 = vmatprep.subr.bf16.mxu0 0
        %819 = vmatpush1.bf16.msra.mxu0 0
        %820 = vmatprep.subr.bf16.mxu0 0
        %821 = vmatpush1.bf16.msra.mxu0 0
        %822 = vmatprep.subr.bf16.mxu0 0
        %823 = vmatpush1.bf16.msra.mxu0 0
        %824 = vmatprep.subr.bf16.mxu0 0
        %825 = vmatpush1.bf16.msra.mxu0 0
        %826 = vmatprep.subr.bf16.mxu0 0
        %827 = vmatpush1.bf16.msra.mxu0 0
        %828 = vmatprep.subr.bf16.mxu0 0
        %829 = vmatpush1.bf16.msra.mxu0 0
        %830 = vmatprep.subr.bf16.mxu0 0
        %831 = vmatpush1.bf16.msra.mxu0 0
        %832 = vmatprep.subr.bf16.mxu0 0
        %833 = vmatpush1.bf16.msra.mxu0 0
        %834 = vmatprep.subr.bf16.mxu0 0
        %835 = vmatpush1.bf16.msra.mxu0 0
        %836 = vmatprep.subr.bf16.mxu0 0
        %837 = vmatpush1.bf16.msra.mxu0 0
        %838 = vmatprep.subr.bf16.mxu0 0
        %839 = vmatpush1.bf16.msra.mxu0 0
        %840 = vmatprep.subr.bf16.mxu0 0
        %841 = vmatpush1.bf16.msra.mxu0 0
        %842 = vmatprep.mubr.bf16.mxu0 0
        %843 = vmatmul.mubr.bf16.gmra.mrb[0].mxu0 %v787
        %v844 = vpop.f32.mrb[0].mxu0
        %v845 = vadd.f32 0.0, %v844
        %v846 = vpop.f32.mrb[0].mxu0
        %v847 = vpop.f32.mrb[0].mxu0
        %v848 = vadd.f32 0.0, %v847
        %v849 = vpop.f32.mrb[0].mxu0
        %850 = vmatprep.mubr.bf16.mxu0 0
        %851 = vmatmul.mubr.bf16.gmra.mrb[0].mxu0 %v790
        %v852 = vpop.f32.mrb[0].mxu0
        %v853 = vadd.f32 0.0, %v852
        %v854 = vpop.f32.mrb[0].mxu0
        %v855 = vpop.f32.mrb[0].mxu0
        %v856 = vadd.f32 0.0, %v855
        %v857 = vpop.f32.mrb[0].mxu0
        %858 = vmatprep.mubr.bf16.mxu0 0
        %859 = vmatmul.mubr.bf16.gmra.mrb[0].mxu0 %v793
        %v860 = vpop.f32.mrb[0].mxu0
        %v861 = vadd.f32 0.0, %v860
        %v862 = vpop.f32.mrb[0].mxu0
        %v863 = vpop.f32.mrb[0].mxu0
        %v864 = vadd.f32 0.0, %v863
        %v865 = vpop.f32.mrb[0].mxu0
        %866 = vmatprep.mubr.bf16.mxu0 0
        %867 = vmatmul.mubr.bf16.gmra.mrb[0].mxu0 %v796
        %v868 = vpop.f32.mrb[0].mxu0
        %v869 = vadd.f32 0.0, %v868
        %v870 = vpop.f32.mrb[0].mxu0
        %v871 = vpop.f32.mrb[0].mxu0
        %v872 = vadd.f32 0.0, %v871
        %v873 = vpop.f32.mrb[0].mxu0
        %874 = vmatprep.mubr.bf16.mxu0 0
        %875 = vmatmul.mubr.bf16.gmra.mrb[0].mxu0 %v799
        %v876 = vpop.f32.mrb[0].mxu0
        %v877 = vadd.f32 0.0, %v876
        %v878 = vpop.f32.mrb[0].mxu0
        %v879 = vpop.f32.mrb[0].mxu0
        %v880 = vadd.f32 0.0, %v879
        %v881 = vpop.f32.mrb[0].mxu0
        %882 = vmatprep.mubr.bf16.mxu0 0
        %883 = vmatmul.mubr.bf16.gmra.mrb[0].mxu0 %v802
        %v884 = vpop.f32.mrb[0].mxu0
        %v885 = vadd.f32 0.0, %v884
        %v886 = vpop.f32.mrb[0].mxu0
        %v887 = vpop.f32.mrb[0].mxu0
        %v888 = vadd.f32 0.0, %v887
        %v889 = vpop.f32.mrb[0].mxu0
        %890 = vmatprep.mubr.bf16.mxu0 0
        %891 = vmatmul.mubr.bf16.gmra.mrb[0].mxu0 %v805
        %v892 = vpop.f32.mrb[0].mxu0
        %v893 = vadd.f32 0.0, %v892
        %v894 = vpop.f32.mrb[0].mxu0
        %v895 = vpop.f32.mrb[0].mxu0
        %v896 = vadd.f32 0.0, %v895
        %v897 = vpop.f32.mrb[0].mxu0
        %898 = vmatprep.mubr.bf16.mxu0 0
        %899 = vmatmul.mubr.bf16.gmra.mrb[0].mxu0 %v808
        %v900 = vpop.f32.mrb[0].mxu0
        %v901 = vadd.f32 0.0, %v900
        %v902 = vpop.f32.mrb[0].mxu0
        %v903 = vpop.f32.mrb[0].mxu0
        %v904 = vadd.f32 0.0, %v903
        %v905 = vpop.f32.mrb[0].mxu0
        %906 = vdwg.mxu0
        %v907 = vld [vmem:[%s3] sm:$0xf]
        %v908 = vld [vmem:[%s3 + $0x4] sm:$0xf]
        %v909 = vld [vmem:[%s3 + $0x8] sm:$0xf]
        %v910 = vld [vmem:[%s3 + $0xc] sm:$0xf]
        %v911 = vld [vmem:[%s3 + $0x10] sm:$0xf]
        %v912 = vld [vmem:[%s3 + $0x14] sm:$0xf]
        %v913 = vld [vmem:[%s3 + $0x18] sm:$0xf]
        %v914 = vld [vmem:[%s3 + $0x1c] sm:$0xf]
        %v923 = vunpack.c.l.b16 %v907
        %v924 = vunpack.c.l.b16 %v908
        %v925 = vunpack.c.l.b16 %v909
        %v926 = vunpack.c.l.b16 %v910
        %v927 = vunpack.c.l.b16 %v911
        %v928 = vunpack.c.l.b16 %v912
        %v929 = vunpack.c.l.b16 %v913
        %v930 = vunpack.c.l.b16 %v914
        %v931 = vpack.c.b16 %v924, %v923
        %v932 = vpack.c.b16 %v926, %v925
        %v933 = vpack.c.b16 %v928, %v927
        %v934 = vpack.c.b16 %v930, %v929
        %939 = vmatprep.subr.bf16.mxu0 0
        %940 = vmatpush1.bf16.msra.mxu0 %v931
        %941 = vmatprep.subr.bf16.mxu0 0
        %942 = vmatpush1.bf16.msra.mxu0 %v932
        %943 = vmatprep.subr.bf16.mxu0 0
        %944 = vmatpush1.bf16.msra.mxu0 %v933
        %945 = vmatprep.subr.bf16.mxu0 0
        %946 = vmatpush1.bf16.msra.mxu0 %v934
        %947 = vmatprep.subr.bf16.mxu0 0
        %948 = vmatpush1.bf16.msra.mxu0 0
        %949 = vmatprep.subr.bf16.mxu0 0
        %950 = vmatpush1.bf16.msra.mxu0 0
        %951 = vmatprep.subr.bf16.mxu0 0
        %952 = vmatpush1.bf16.msra.mxu0 0
        %953 = vmatprep.subr.bf16.mxu0 0
        %954 = vmatpush1.bf16.msra.mxu0 0
        %955 = vmatprep.subr.bf16.mxu0 0
        %956 = vmatpush1.bf16.msra.mxu0 0
        %957 = vmatprep.subr.bf16.mxu0 0
        %958 = vmatpush1.bf16.msra.mxu0 0
        %959 = vmatprep.subr.bf16.mxu0 0
        %960 = vmatpush1.bf16.msra.mxu0 0
        %961 = vmatprep.subr.bf16.mxu0 0
        %962 = vmatpush1.bf16.msra.mxu0 0
        %963 = vmatprep.subr.bf16.mxu0 0
        %964 = vmatpush1.bf16.msra.mxu0 0
        %965 = vmatprep.subr.bf16.mxu0 0
        %966 = vmatpush1.bf16.msra.mxu0 0
        %967 = vmatprep.subr.bf16.mxu0 0
        %968 = vmatpush1.bf16.msra.mxu0 0
        %969 = vmatprep.subr.bf16.mxu0 0
        %970 = vmatpush1.bf16.msra.mxu0 0
        %971 = vmatprep.mubr.bf16.mxu0 0
        %972 = vmatmul.mubr.bf16.gmra.mrb[0].mxu0 %v787
        %v973 = vpop.f32.mrb[0].mxu0
        %v974 = vadd.f32 0.0, %v973
        %v975 = vpop.f32.mrb[0].mxu0
        %v976 = vpop.f32.mrb[0].mxu0
        %v977 = vadd.f32 0.0, %v976
        %v978 = vpop.f32.mrb[0].mxu0
        %979 = vmatprep.mubr.bf16.mxu0 0
        %980 = vmatmul.mubr.bf16.gmra.mrb[0].mxu0 %v790
        %v981 = vpop.f32.mrb[0].mxu0
        %v982 = vadd.f32 0.0, %v981
        %v983 = vpop.f32.mrb[0].mxu0
        %v984 = vpop.f32.mrb[0].mxu0
        %v985 = vadd.f32 0.0, %v984
        %v986 = vpop.f32.mrb[0].mxu0
        %987 = vmatprep.mubr.bf16.mxu0 0
        %988 = vmatmul.mubr.bf16.gmra.mrb[0].mxu0 %v793
        %v989 = vpop.f32.mrb[0].mxu0
        %v990 = vadd.f32 0.0, %v989
        %v991 = vpop.f32.mrb[0].mxu0
        %v992 = vpop.f32.mrb[0].mxu0
        %v993 = vadd.f32 0.0, %v992
        %v994 = vpop.f32.mrb[0].mxu0
        %995 = vmatprep.mubr.bf16.mxu0 0
        %996 = vmatmul.mubr.bf16.gmra.mrb[0].mxu0 %v796
        %v997 = vpop.f32.mrb[0].mxu0
        %v998 = vadd.f32 0.0, %v997
        %v999 = vpop.f32.mrb[0].mxu0
        %v1000 = vpop.f32.mrb[0].mxu0
        %v1001 = vadd.f32 0.0, %v1000
        %v1002 = vpop.f32.mrb[0].mxu0
        %1003 = vmatprep.mubr.bf16.mxu0 0
        %1004 = vmatmul.mubr.bf16.gmra.mrb[0].mxu0 %v799
        %v1005 = vpop.f32.mrb[0].mxu0
        %v1006 = vadd.f32 0.0, %v1005
        %v1007 = vpop.f32.mrb[0].mxu0
        %v1008 = vpop.f32.mrb[0].mxu0
        %v1009 = vadd.f32 0.0, %v1008
        %v1010 = vpop.f32.mrb[0].mxu0
        %1011 = vmatprep.mubr.bf16.mxu0 0
        %1012 = vmatmul.mubr.bf16.gmra.mrb[0].mxu0 %v802
        %v1013 = vpop.f32.mrb[0].mxu0
        %v1014 = vadd.f32 0.0, %v1013
        %v1015 = vpop.f32.mrb[0].mxu0
        %v1016 = vpop.f32.mrb[0].mxu0
        %v1017 = vadd.f32 0.0, %v1016
        %v1018 = vpop.f32.mrb[0].mxu0
        %1019 = vmatprep.mubr.bf16.mxu0 0
        %1020 = vmatmul.mubr.bf16.gmra.mrb[0].mxu0 %v805
        %v1021 = vpop.f32.mrb[0].mxu0
        %v1022 = vadd.f32 0.0, %v1021
        %v1023 = vpop.f32.mrb[0].mxu0
        %v1024 = vpop.f32.mrb[0].mxu0
        %v1025 = vadd.f32 0.0, %v1024
        %v1026 = vpop.f32.mrb[0].mxu0
        %1027 = vmatprep.mubr.bf16.mxu0 0
        %1028 = vmatmul.mubr.bf16.gmra.mrb[0].mxu0 %v808
        %v1029 = vpop.f32.mrb[0].mxu0
        %v1030 = vadd.f32 0.0, %v1029
        %v1031 = vpop.f32.mrb[0].mxu0
        %v1032 = vpop.f32.mrb[0].mxu0
        %v1033 = vadd.f32 0.0, %v1032
        %v1034 = vpop.f32.mrb[0].mxu0
        %1035 = vdwg.mxu0
        %vm1036 = vcmask 261120
        %1037 = vst.msk [vmem:[%s321] sm:$0xff] %vm1036, %v845
        %1038 = vst.msk [vmem:[%s321 + $0x8] sm:$0xff] %vm1036, %v848
        %1039 = vst.msk [vmem:[%s321 + $0x10] sm:$0xff] %vm1036, %v853
        %1040 = vst.msk [vmem:[%s321 + $0x18] sm:$0xff] %vm1036, %v856
        %1041 = vst.msk [vmem:[%s321 + $0x20] sm:$0xff] %vm1036, %v861
        %1042 = vst.msk [vmem:[%s321 + $0x28] sm:$0xff] %vm1036, %v864
        %1043 = vst.msk [vmem:[%s321 + $0x30] sm:$0xff] %vm1036, %v869
        %1044 = vst.msk [vmem:[%s321 + $0x38] sm:$0xff] %vm1036, %v872
        %1045 = vst.msk [vmem:[%s321 + $0x40] sm:$0xff] %vm1036, %v877
        %1046 = vst.msk [vmem:[%s321 + $0x48] sm:$0xff] %vm1036, %v880
        %1047 = vst.msk [vmem:[%s321 + $0x50] sm:$0xff] %vm1036, %v885
        %1048 = vst.msk [vmem:[%s321 + $0x58] sm:$0xff] %vm1036, %v888
        %1049 = vst.msk [vmem:[%s321 + $0x60] sm:$0xff] %vm1036, %v893
        %1050 = vst.msk [vmem:[%s321 + $0x68] sm:$0xff] %vm1036, %v896
        %1051 = vst.msk [vmem:[%s321 + $0x70] sm:$0xff] %vm1036, %v901
        %1052 = vst.msk [vmem:[%s321 + $0x78] sm:$0xff] %vm1036, %v904
        %1053 = vst.msk [vmem:[%s327] sm:$0xff] %vm1036, %v974
        %1054 = vst.msk [vmem:[%s327 + $0x8] sm:$0xff] %vm1036, %v977
        %1055 = vst.msk [vmem:[%s327 + $0x10] sm:$0xff] %vm1036, %v982
        %1056 = vst.msk [vmem:[%s327 + $0x18] sm:$0xff] %vm1036, %v985
        %1057 = vst.msk [vmem:[%s327 + $0x20] sm:$0xff] %vm1036, %v990
        %1058 = vst.msk [vmem:[%s327 + $0x28] sm:$0xff] %vm1036, %v993
        %1059 = vst.msk [vmem:[%s327 + $0x30] sm:$0xff] %vm1036, %v998
        %1060 = vst.msk [vmem:[%s327 + $0x38] sm:$0xff] %vm1036, %v1001
        %1061 = vst.msk [vmem:[%s327 + $0x40] sm:$0xff] %vm1036, %v1006
        %1062 = vst.msk [vmem:[%s327 + $0x48] sm:$0xff] %vm1036, %v1009
        %1063 = vst.msk [vmem:[%s327 + $0x50] sm:$0xff] %vm1036, %v1014
        %1064 = vst.msk [vmem:[%s327 + $0x58] sm:$0xff] %vm1036, %v1017
        %1065 = vst.msk [vmem:[%s327 + $0x60] sm:$0xff] %vm1036, %v1022
        %1066 = vst.msk [vmem:[%s327 + $0x68] sm:$0xff] %vm1036, %v1025
        %1067 = vst.msk [vmem:[%s327 + $0x70] sm:$0xff] %vm1036, %v1030
        %1068 = vst.msk [vmem:[%s327 + $0x78] sm:$0xff] %vm1036, %v1033
        %v1069 = vpack.c.bf16 %v848, %v845
        %v1070 = vpack.c.bf16 %v856, %v853
        %v1071 = vpack.c.bf16 %v864, %v861
        %v1072 = vpack.c.bf16 %v872, %v869
        %v1073 = vpack.c.bf16 %v880, %v877
        %v1074 = vpack.c.bf16 %v888, %v885
        %v1075 = vpack.c.bf16 %v896, %v893
        %v1076 = vpack.c.bf16 %v904, %v901
        %v1085 = vunpack.c.l.b16 %v1069
        %v1086 = vunpack.c.h.b16 %v1069
        %v1087 = vunpack.c.l.b16 %v1070
        %v1088 = vunpack.c.h.b16 %v1070
        %v1089 = vunpack.c.l.b16 %v1071
        %v1090 = vunpack.c.h.b16 %v1071
        %v1091 = vunpack.c.l.b16 %v1072
        %v1092 = vunpack.c.h.b16 %v1072
        %v1093 = vunpack.c.l.b16 %v1073
        %v1094 = vunpack.c.h.b16 %v1073
        %v1095 = vunpack.c.l.b16 %v1074
        %v1096 = vunpack.c.h.b16 %v1074
        %v1097 = vunpack.c.l.b16 %v1075
        %v1098 = vunpack.c.h.b16 %v1075
        %v1099 = vunpack.c.l.b16 %v1076
        %v1100 = vunpack.c.h.b16 %v1076
        %v1101 = vpack.c.b16 %v1085, %v1085
        %v1102 = vpack.c.b16 %v1086, %v1086
        %v1103 = vpack.c.b16 %v1087, %v1087
        %v1104 = vpack.c.b16 %v1088, %v1088
        %v1105 = vpack.c.b16 %v1089, %v1089
        %v1106 = vpack.c.b16 %v1090, %v1090
        %v1107 = vpack.c.b16 %v1091, %v1091
        %v1108 = vpack.c.b16 %v1092, %v1092
        %v1109 = vpack.c.b16 %v1093, %v1093
        %v1110 = vpack.c.b16 %v1094, %v1094
        %v1111 = vpack.c.b16 %v1095, %v1095
        %v1112 = vpack.c.b16 %v1096, %v1096
        %v1113 = vpack.c.b16 %v1097, %v1097
        %v1114 = vpack.c.b16 %v1098, %v1098
        %v1115 = vpack.c.b16 %v1099, %v1099
        %v1116 = vpack.c.b16 %v1100, %v1100
        %vm1133 = vcmask 257024
        %1134 = vst.msk [vmem:[%s333] sm:$0xf] %vm1133, %v1101
        %1135 = vst.msk [vmem:[%s333 + $0x4] sm:$0xf] %vm1133, %v1102
        %1136 = vst.msk [vmem:[%s333 + $0x8] sm:$0xf] %vm1133, %v1103
        %1137 = vst.msk [vmem:[%s333 + $0xc] sm:$0xf] %vm1133, %v1104
        %1138 = vst.msk [vmem:[%s333 + $0x10] sm:$0xf] %vm1133, %v1105
        %1139 = vst.msk [vmem:[%s333 + $0x14] sm:$0xf] %vm1133, %v1106
        %1140 = vst.msk [vmem:[%s333 + $0x18] sm:$0xf] %vm1133, %v1107
        %1141 = vst.msk [vmem:[%s333 + $0x1c] sm:$0xf] %vm1133, %v1108
        %1142 = vst.msk [vmem:[%s333 + $0x20] sm:$0xf] %vm1133, %v1109
        %1143 = vst.msk [vmem:[%s333 + $0x24] sm:$0xf] %vm1133, %v1110
        %1144 = vst.msk [vmem:[%s333 + $0x28] sm:$0xf] %vm1133, %v1111
        %1145 = vst.msk [vmem:[%s333 + $0x2c] sm:$0xf] %vm1133, %v1112
        %1146 = vst.msk [vmem:[%s333 + $0x30] sm:$0xf] %vm1133, %v1113
        %1147 = vst.msk [vmem:[%s333 + $0x34] sm:$0xf] %vm1133, %v1114
        %1148 = vst.msk [vmem:[%s333 + $0x38] sm:$0xf] %vm1133, %v1115
        %1149 = vst.msk [vmem:[%s333 + $0x3c] sm:$0xf] %vm1133, %v1116
      $region44: #{gcn_vaecd_forward.4} parent=35 // pred_fallthru
        _
      %s1150 = smul.u32 16, %s22
      %p1151 = scmp.lt.s32.totalorder %s1150, 31
      %s1152 = scalar_select %p1151, %s1150, 31
      %s1153 = smul.addr %s1152, 8
      %s1154 = scalar_lea.vmem %s4, %s1153
      %s1155 = smul.u32 16, %s22
      %p1156 = scmp.lt.s32.totalorder %s1155, 31
      %s1157 = scalar_select %p1156, %s1155, 31
      %s1158 = smul.addr %s1157, 8
      %s1159 = scalar_lea.vmem %s5, %s1158
      %s1160 = smul.u32 16, %s22
      %p1161 = scmp.lt.s32.totalorder %s1160, 31
      %s1162 = scalar_select %p1161, %s1160, 31
      %s1163 = smul.addr %s1162, 4
      %s1164 = scalar_lea.vmem %s6, %s1163
      // Predicated region
      $region45: #{gcn_vaecd_forward.4} parent=35 // pred_check
        %p1165 = pneg %p144
      $region46: #{gcn_vaecd_forward.4} parent=35 // pred_check_branch
        %1167 = sbr.rel (%p1165) target = $region48
      $region47: #{gcn_vaecd_forward.4} parent=35 // pred_region
        %s1168 = smul.u32 16, %s22
      $region48: #{gcn_vaecd_forward.4} parent=35 // pred_fallthru
        _
      // Predicated region
      $region49: #{gcn_vaecd_forward.4} parent=35 // pred_check
        %p1169 = pneg %p170
      $region50: #{gcn_vaecd_forward.4} parent=35 // pred_check_branch
        %1171 = sbr.rel (%p1169) target = $region52
      $region51: #{gcn_vaecd_forward.4} parent=35 // pred_region
        %s1172 = smul.u32 16, %s22
      $region52: #{gcn_vaecd_forward.4} parent=35 // pred_fallthru
        _
      // Predicated region
      $region53: #{gcn_vaecd_forward.4} parent=35 // pred_check
        %p1173 = pneg %p196
      $region54: #{gcn_vaecd_forward.4} parent=35 // pred_check_branch
        %1175 = sbr.rel (%p1173) target = $region56
      $region55: #{gcn_vaecd_forward.4} parent=35 // pred_region
        %s1176 = smul.u32 16, %s22
      $region56: #{gcn_vaecd_forward.4} parent=35 // pred_fallthru
        _
    $region36: #{gcn_vaecd_forward.4} parent=5 // pred_fallthru
      _
    %p1177 = scmp.le.s32.totalorder 2, %s13
    // Predicated region
    $region57: #{gcn_vaecd_forward.4} parent=5 // pred_check
      %p1178 = pneg %p1177
    $region58: #{gcn_vaecd_forward.4} parent=5 // pred_check_branch
      %1180 = sbr.rel (%p1178) target = $region60
    $region59: #{gcn_vaecd_forward.4} parent=5 // pred_region
      %s1181 = ssub.s32 %s13, 2
      // Predicated region
      $region61: #{gcn_vaecd_forward.4} parent=59 // pred_check
        %p1182 = pneg %p150
      $region62: #{gcn_vaecd_forward.4} parent=59 // pred_check_branch
        %1184 = sbr.rel (%p1182) target = $region64
      $region63: #{gcn_vaecd_forward.4} parent=59 // pred_region
        %s1185 = smul.u32 16, %s24
        %p1186 = scmp.lt.s32.totalorder %s1185, 31
        %s1187 = scalar_select %p1186, %s1185, 31
        %s1188 = smul.addr %s1187, 8
        %s1189 = scalar_lea.vmem %s4, %s1188
      $region64: #{gcn_vaecd_forward.4} parent=59 // pred_fallthru
        _
      // Predicated region
      $region65: #{gcn_vaecd_forward.4} parent=59 // pred_check
        %p1190 = pneg %p176
      $region66: #{gcn_vaecd_forward.4} parent=59 // pred_check_branch
        %1192 = sbr.rel (%p1190) target = $region68
      $region67: #{gcn_vaecd_forward.4} parent=59 // pred_region
        %s1193 = smul.u32 16, %s24
        %p1194 = scmp.lt.s32.totalorder %s1193, 31
        %s1195 = scalar_select %p1194, %s1193, 31
        %s1196 = smul.addr %s1195, 8
        %s1197 = scalar_lea.vmem %s5, %s1196
      $region68: #{gcn_vaecd_forward.4} parent=59 // pred_fallthru
        _
      // Predicated region
      $region69: #{gcn_vaecd_forward.4} parent=59 // pred_check
        %p1198 = pneg %p202
      $region70: #{gcn_vaecd_forward.4} parent=59 // pred_check_branch
        %1200 = sbr.rel (%p1198) target = $region72
      $region71: #{gcn_vaecd_forward.4} parent=59 // pred_region
        %s1201 = smul.u32 16, %s24
        %p1202 = scmp.lt.s32.totalorder %s1201, 31
        %s1203 = scalar_select %p1202, %s1201, 31
        %s1204 = smul.addr %s1203, 4
        %s1205 = scalar_lea.vmem %s6, %s1204
      $region72: #{gcn_vaecd_forward.4} parent=59 // pred_fallthru
        _
    $region60: #{gcn_vaecd_forward.4} parent=5 // pred_fallthru
      _
  $region6: #{gcn_vaecd_forward.4} parent=0 // loop_footer
    %s17 = sadd.s32 1, %s13
  $region7: #{gcn_vaecd_forward.4} parent=0 // loop_footer_branch
    %12 = sbr.rel target = $region3
  $region8: #{gcn_vaecd_forward.4} parent=0 // loop_exit
    _

</llo_original>
